<compile_context>
chip_gen: v7x
topology: tpu7x:2x2x1
jax: 0.10.0
libtpu: 0.0.40
codegen_flags: <defaults>
</compile_context>

<pallas_src>
import jax
import jax.numpy as jnp
from jax import lax
from jax.experimental import pallas as pl
from jax.experimental.pallas import tpu as pltpu


_BN_EPS = 1e-5


def _round_up(n, m):
    return -(-n // m) * m


# ---------------------------------------------------------------------------
# Fused kernel: whole model for one sub-batch block
# ---------------------------------------------------------------------------
def _cnn1d_kernel(x_ref, *rest):
    """x_ref: (BT, C0p, L); rest: (W1aug, W2aug) per stage, then out_ref.

    Inside the kernel activations live as (C, BT*L): channels on sublanes,
    the BT samples of the block concatenated along the lane-dense position
    axis.
    """
    out_ref = rest[-1]
    w_refs = rest[:-1]
    n_stages = len(w_refs) // 2
    bt, _, L = x_ref.shape
    n = bt * L

    # Per-sample lane position + edge masks (shared by every stage).
    pos = lax.broadcasted_iota(jnp.int32, (1, n), 1) % L
    first = pos == 0
    first2 = pos <= 1
    last = pos == L - 1
    last2 = pos >= L - 2

    # Constant block appended under every matmul stack: row 0 is all-ones
    # (multiplies the folded bias column), rows 1..7 are zero (keeps the
    # sublane stack 8-aligned).
    const_rows = (lax.broadcasted_iota(jnp.int32, (8, n), 0) == 0).astype(
        jnp.float32)

    def taps5(a):
        # taps5(a)[k][:, j] == a[:, clamp(j + k - 2)] per sample (replicate
        # padding of 2).  pltpu.roll follows jnp.roll semantics: positive
        # shift moves data towards higher lane indices.
        r_m1 = pltpu.roll(a, 1, axis=1)        # a[j-1] (wraps at edges)
        r_m2 = pltpu.roll(a, 2, axis=1)        # a[j-2]
        r_p1 = pltpu.roll(a, n - 1, axis=1)    # a[j+1]
        r_p2 = pltpu.roll(a, n - 2, axis=1)    # a[j+2]
        s_m1 = jnp.where(first, a, r_m1)
        s_m2 = jnp.where(first2, s_m1, r_m2)
        s_p1 = jnp.where(last, a, r_p1)
        s_p2 = jnp.where(last2, s_p1, r_p2)
        return [s_m2, s_m1, a, s_p1, s_p2]

    def avgpool3(a):
        # AvgPool1d(k=3, s=1, p=1, count_include_pad=True): zero pad per sample
        left = jnp.where(first, 0.0, pltpu.roll(a, 1, axis=1))
        right = jnp.where(last, 0.0, pltpu.roll(a, n - 1, axis=1))
        return (left + a + right) * (1.0 / 3.0)

    # Stage-1 input: lane-concatenate the BT samples -> (C0p, BT*L).
    if bt == 1:
        h = x_ref[0]
    else:
        h = jnp.concatenate([x_ref[i] for i in range(bt)], axis=1)

    # 5 x (Conv1dBlock + AvgPool): 2 matmuls per block; weights loaded per
    # stage (not hoisted) to keep vreg live ranges bounded.
    for s in range(n_stages):
        w1 = w_refs[2 * s][...]      # (Cop, 5*Cip + 8)        [conv1 | b1]
        w2 = w_refs[2 * s + 1][...]  # (Cop, 5*Cop + Cip + 8)  [conv2|skip|b2+bd]
        x_in = h
        stack1 = jnp.concatenate(taps5(x_in) + [const_rows], axis=0)
        h1 = jnp.maximum(
            jnp.dot(w1, stack1, preferred_element_type=jnp.float32), 0.0)
        # Dropout1d(p=0.0) == identity.
        stack2 = jnp.concatenate(taps5(h1) + [x_in, const_rows], axis=0)
        h = jnp.maximum(
            jnp.dot(w2, stack2, preferred_element_type=jnp.float32), 0.0)
        h = avgpool3(h)

    # Un-concatenate the samples; stores stay lane-dense (C, L) tiles.
    for i in range(bt):
        out_ref[i] = h[:, i * L:(i + 1) * L]


def cnn1d_forward(x, slabs, out_channels, samples_per_block=1):
    """x: (B, L, C_in) float32 -> (B, L, out_channels) float32."""
    B, L, c_in = x.shape
    bt = samples_per_block
    assert B % bt == 0, "samples_per_block must divide the batch size"
    cin_p = (slabs[0].shape[1] - 8) // 5      # stage-1 padded input channels
    cout_p = slabs[-1].shape[0]               # last-stage padded out channels

    xt = jnp.transpose(x, (0, 2, 1))          # (B, C_in, L), lane-dense
    if cin_p > c_in:
        xt = jnp.pad(xt, ((0, 0), (0, cin_p - c_in), (0, 0)))

    in_specs = [pl.BlockSpec((bt, cin_p, L), lambda b: (b, 0, 0))]
    in_specs += [pl.BlockSpec(w.shape, lambda b: (0, 0)) for w in slabs]

    res = pl.pallas_call(
        _cnn1d_kernel,
        grid=(B // bt,),
        in_specs=in_specs,
        out_specs=pl.BlockSpec((bt, cout_p, L), lambda b: (b, 0, 0)),
        out_shape=jax.ShapeDtypeStruct((B, cout_p, L), jnp.float32),
        compiler_params=pltpu.CompilerParams(
            dimension_semantics=("parallel",)),
    )(xt, *slabs)
    return jnp.transpose(res[:, :out_channels, :], (0, 2, 1))


# ---------------------------------------------------------------------------
# Parameter construction (deterministic), BN folding (eval) and slab packing
# ---------------------------------------------------------------------------
def _fold_bn(w, b, bn):
    gamma, beta, mean, var = bn
    s = gamma / jnp.sqrt(var + _BN_EPS)
    return w * s[:, None, None], s * b + beta - s * mean


def init_block_params(key, cin, cout):
    ks = jax.random.split(key, 8)

    def conv_init(k, shape, fan_in):
        bound = 1.0 / float(fan_in) ** 0.5
        return jax.random.uniform(k, shape, jnp.float32, -bound, bound)

    def bn_init(k):
        k1, k2, k3, k4 = jax.random.split(k, 4)
        gamma = 1.0 + 0.1 * jax.random.normal(k1, (cout,), jnp.float32)
        beta = 0.1 * jax.random.normal(k2, (cout,), jnp.float32)
        mean = 0.1 * jax.random.normal(k3, (cout,), jnp.float32)
        var = jnp.abs(jax.random.normal(k4, (cout,), jnp.float32)) + 0.5
        return gamma, beta, mean, var

    w1 = conv_init(ks[0], (cout, cin, 5), cin * 5)
    b1 = conv_init(ks[1], (cout,), cin * 5)
    w2 = conv_init(ks[2], (cout, cout, 5), cout * 5)
    b2 = conv_init(ks[3], (cout,), cout * 5)
    wd = conv_init(ks[4], (cout, cin, 1), cin)           # 1x1 conv, bias=False

    w1f, b1f = _fold_bn(w1, b1, bn_init(ks[5]))
    w2f, b2f = _fold_bn(w2, b2, bn_init(ks[6]))
    wdf, bdf = _fold_bn(wd, jnp.zeros((cout,), jnp.float32), bn_init(ks[7]))

    return {"w1f": w1f, "b1f": b1f, "w2f": w2f, "b2f": b2f,
            "wdf": wdf[:, :, 0], "bdf": bdf}


def pack_stage_weights(p):
    """Two per-stage slabs consumed by the kernel.

    W1aug = [W1cat | b1 | 0x7]                       (Coutp, 5*Cinp + 8)
    W2aug = [W2cat | W_skip | b2 + b_skip | 0x7]     (Coutp, 5*Coutp + Cinp + 8)
    Channels zero-padded to multiples of 8 so the tap stacks are sublane
    aligned and every conv is a single MXU matmul.
    """
    cout, cin, _ = p["w1f"].shape
    cinp, coutp = _round_up(cin, 8), _round_up(cout, 8)

    w1 = jnp.pad(p["w1f"], ((0, coutp - cout), (0, cinp - cin), (0, 0)))
    w2 = jnp.pad(p["w2f"], ((0, coutp - cout), (0, coutp - cout), (0, 0)))
    wd = jnp.pad(p["wdf"], ((0, coutp - cout), (0, cinp - cin)))
    b1 = jnp.pad(p["b1f"], (0, coutp - cout))
    b2d = jnp.pad(p["b2f"] + p["bdf"], (0, coutp - cout))

    w1cat = jnp.transpose(w1, (0, 2, 1)).reshape(coutp, 5 * cinp)
    w2cat = jnp.transpose(w2, (0, 2, 1)).reshape(coutp, 5 * coutp)
    z7 = jnp.zeros((coutp, 7), jnp.float32)
    w1aug = jnp.concatenate([w1cat, b1[:, None], z7], axis=1)
    w2aug = jnp.concatenate([w2cat, wd, b2d[:, None], z7], axis=1)
    return w1aug, w2aug


# ---------------------------------------------------------------------------
# Pure-JAX reference (self-check)
# ---------------------------------------------------------------------------
def _ref_block(x, p):
    def conv5(z, w, b):
        zp = jnp.pad(z, ((0, 0), (0, 0), (2, 2)), mode="edge")
        y = lax.conv_general_dilated(
            zp, w, window_strides=(1,), padding="VALID",
            dimension_numbers=("NCH", "OIH", "NCH"),
            precision=lax.Precision.HIGHEST)
        return y + b[None, :, None]

    h1 = jnp.maximum(conv5(x, p["w1f"], p["b1f"]), 0.0)
    h2 = conv5(h1, p["w2f"], p["b2f"])
    ds = jnp.einsum("oi,bil->bol", p["wdf"], x,
                    precision=lax.Precision.HIGHEST)
    ds = ds + p["bdf"][None, :, None]
    return jnp.maximum(h2 + ds, 0.0)


def _ref_pool(x):
    L = x.shape[-1]
    xp = jnp.pad(x, ((0, 0), (0, 0), (1, 1)))
    return (xp[..., 0:L] + xp[..., 1:L + 1] + xp[..., 2:L + 2]) / 3.0


def _ref_model(x, params):
    x = jnp.transpose(x, (0, 2, 1))
    for p in params:
        x = _ref_pool(_ref_block(x, p))
    return jnp.transpose(x, (0, 2, 1))


# ---------------------------------------------------------------------------
if __name__ == "__main__":
    key = jax.random.PRNGKey(0)
    in_channels = 4
    B, L = 2, 128                     # L = 128 -> fully lane-dense activations
    stage_io = [(in_channels, 2 * in_channels),
                (2 * in_channels, 4 * in_channels),
                (4 * in_channels, 4 * in_channels),
                (4 * in_channels, 2 * in_channels),
                (2 * in_channels, in_channels)]

    kx, kp = jax.random.split(key)
    x = jax.random.normal(kx, (B, L, in_channels), jnp.float32)

    stage_keys = jax.random.split(kp, len(stage_io))
    params = [init_block_params(k, ci, co)
              for k, (ci, co) in zip(stage_keys, stage_io)]
    slabs = []
    for p in params:
        slabs.extend(pack_stage_weights(p))

    ref = _ref_model(x, params)

    fwd = jax.jit(cnn1d_forward,
                  static_argnames=("out_channels", "samples_per_block"))

    # Per-sample blocks: grid=(B,), "parallel" -> shards across v7x TCs.
    out1 = jax.block_until_ready(
        fwd(x, slabs, out_channels=in_channels, samples_per_block=1))
    # Whole batch lane-concatenated into one block: fewest / widest matmuls
    # (best on single-TensorCore v5e / v6e).
    out2 = jax.block_until_ready(
        fwd(x, slabs, out_channels=in_channels, samples_per_block=B))

    assert out1.shape == (B, L, in_channels), out1.shape
    assert out2.shape == (B, L, in_channels), out2.shape
    for out in (out1, out2):
        max_err = float(jnp.max(jnp.abs(out - ref)))
        assert jnp.allclose(out, ref, rtol=1e-3, atol=1e-3), max_err

    print("KERNEL_OK")
</pallas_src>

<mosaic_0001>
module attributes {stable_mosaic.version = 11 : i64} {
  func.func @_cnn1d_kernel(%arg0: i32, %arg1: memref<1x8x128xf32, #tpu.memory_space<vmem>>, %arg2: memref<8x48xf32, #tpu.memory_space<vmem>>, %arg3: memref<8x56xf32, #tpu.memory_space<vmem>>, %arg4: memref<16x48xf32, #tpu.memory_space<vmem>>, %arg5: memref<16x96xf32, #tpu.memory_space<vmem>>, %arg6: memref<16x88xf32, #tpu.memory_space<vmem>>, %arg7: memref<16x104xf32, #tpu.memory_space<vmem>>, %arg8: memref<8x88xf32, #tpu.memory_space<vmem>>, %arg9: memref<8x64xf32, #tpu.memory_space<vmem>>, %arg10: memref<8x48xf32, #tpu.memory_space<vmem>>, %arg11: memref<8x56xf32, #tpu.memory_space<vmem>>, %arg12: memref<1x8x128xf32, #tpu.memory_space<vmem>>) attributes {dimension_semantics = [#tpu.dimension_semantics<parallel>], iteration_bounds = array<i64: 2>, scalar_prefetch = 0 : i64, scratch_operands = 0 : i64, tpu.core_type = #tpu.core_type<tc>, window_params = [{transform_indices = @transform_0, window_bounds = array<i64: 1, 8, 128>}, {pipeline_mode = #tpu.pipeline_mode<synchronous>, transform_indices = @transform_1, window_bounds = array<i64: 8, 48>}, {pipeline_mode = #tpu.pipeline_mode<synchronous>, transform_indices = @transform_2, window_bounds = array<i64: 8, 56>}, {pipeline_mode = #tpu.pipeline_mode<synchronous>, transform_indices = @transform_3, window_bounds = array<i64: 16, 48>}, {pipeline_mode = #tpu.pipeline_mode<synchronous>, transform_indices = @transform_4, window_bounds = array<i64: 16, 96>}, {pipeline_mode = #tpu.pipeline_mode<synchronous>, transform_indices = @transform_5, window_bounds = array<i64: 16, 88>}, {pipeline_mode = #tpu.pipeline_mode<synchronous>, transform_indices = @transform_6, window_bounds = array<i64: 16, 104>}, {pipeline_mode = #tpu.pipeline_mode<synchronous>, transform_indices = @transform_7, window_bounds = array<i64: 8, 88>}, {pipeline_mode = #tpu.pipeline_mode<synchronous>, transform_indices = @transform_8, window_bounds = array<i64: 8, 64>}, {pipeline_mode = #tpu.pipeline_mode<synchronous>, transform_indices = @transform_9, window_bounds = array<i64: 8, 48>}, {pipeline_mode = #tpu.pipeline_mode<synchronous>, transform_indices = @transform_10, window_bounds = array<i64: 8, 56>}, {transform_indices = @transform_11, window_bounds = array<i64: 1, 8, 128>}]} {
    %0 = tpu.iota {dimensions = array<i32: 1>} : vector<1x128xi32>
    %c128_i32 = arith.constant 128 : i32
    %c0_i32 = arith.constant 0 : i32
    %1 = arith.cmpi eq, %c128_i32, %c0_i32 : i32
    %c1_i32 = arith.constant 1 : i32
    %2 = arith.select %1, %c1_i32, %c128_i32 : i32
    %3 = vector.broadcast %2 : i32 to vector<1x128xi32>
    %4 = arith.remsi %0, %3 : vector<1x128xi32>
    %c0_i32_0 = arith.constant 0 : i32
    %5 = vector.broadcast %c0_i32_0 : i32 to vector<1x128xi32>
    %6 = arith.cmpi ne, %4, %5 : vector<1x128xi32>
    %c0_i32_1 = arith.constant 0 : i32
    %7 = vector.broadcast %c0_i32_1 : i32 to vector<1x128xi32>
    %8 = arith.cmpi slt, %4, %7 : vector<1x128xi32>
    %c0_i32_2 = arith.constant 0 : i32
    %9 = arith.cmpi slt, %2, %c0_i32_2 : i32
    %10 = vector.broadcast %9 : i1 to vector<1x128xi1>
    %11 = vector.broadcast %10 : vector<1x128xi1> to vector<1x128xi1>
    %12 = arith.xori %8, %11 : vector<1x128xi1>
    %13 = arith.andi %12, %6 : vector<1x128xi1>
    %14 = vector.broadcast %2 : i32 to vector<1x128xi32>
    %15 = arith.addi %4, %14 : vector<1x128xi32>
    %16 = arith.select %13, %15, %4 : vector<1x128xi1>, vector<1x128xi32>
    %c0_i32_3 = arith.constant 0 : i32
    %17 = vector.broadcast %c0_i32_3 : i32 to vector<1x128xi32>
    %18 = arith.cmpi eq, %16, %17 : vector<1x128xi32>
    %c1_i32_4 = arith.constant 1 : i32
    %19 = vector.broadcast %c1_i32_4 : i32 to vector<1x128xi32>
    %20 = arith.cmpi sle, %16, %19 : vector<1x128xi32>
    %c127_i32 = arith.constant 127 : i32
    %21 = vector.broadcast %c127_i32 : i32 to vector<1x128xi32>
    %22 = arith.cmpi eq, %16, %21 : vector<1x128xi32>
    %c126_i32 = arith.constant 126 : i32
    %23 = vector.broadcast %c126_i32 : i32 to vector<1x128xi32>
    %24 = arith.cmpi sge, %16, %23 : vector<1x128xi32>
    %25 = tpu.iota {dimensions = array<i32: 0>} : vector<8x128xi32>
    %c0_i32_5 = arith.constant 0 : i32
    %26 = vector.broadcast %c0_i32_5 : i32 to vector<8x128xi32>
    %27 = arith.cmpi eq, %25, %26 : vector<8x128xi32>
    %28 = arith.extui %27 : vector<8x128xi1> to vector<8x128xi32>
    %29 = arith.sitofp %28 : vector<8x128xi32> to vector<8x128xf32>
    %c0 = arith.constant 0 : index
    %c0_6 = arith.constant 0 : index
    %c0_7 = arith.constant 0 : index
    %30 = vector.load %arg1[%c0, %c0_6, %c0_7] : memref<1x8x128xf32, #tpu.memory_space<vmem>>, vector<1x8x128xf32>
    %31 = vector.shape_cast %30 : vector<1x8x128xf32> to vector<8x128xf32>
    %c0_8 = arith.constant 0 : index
    %c0_9 = arith.constant 0 : index
    %32 = vector.load %arg2[%c0_8, %c0_9] : memref<8x48xf32, #tpu.memory_space<vmem>>, vector<8x48xf32>
    %c0_10 = arith.constant 0 : index
    %c0_11 = arith.constant 0 : index
    %33 = vector.load %arg3[%c0_10, %c0_11] : memref<8x56xf32, #tpu.memory_space<vmem>>, vector<8x56xf32>
    %c1_i32_12 = arith.constant 1 : i32
    %34 = tpu.dynamic_rotate %31 by %c1_i32_12 dim 1 : vector<8x128xf32>, i32 -> vector<8x128xf32>
    %c2_i32 = arith.constant 2 : i32
    %35 = tpu.dynamic_rotate %31 by %c2_i32 dim 1 : vector<8x128xf32>, i32 -> vector<8x128xf32>
    %c127_i32_13 = arith.constant 127 : i32
    %36 = tpu.dynamic_rotate %31 by %c127_i32_13 dim 1 : vector<8x128xf32>, i32 -> vector<8x128xf32>
    %c126_i32_14 = arith.constant 126 : i32
    %37 = tpu.dynamic_rotate %31 by %c126_i32_14 dim 1 : vector<8x128xf32>, i32 -> vector<8x128xf32>
    %38 = vector.shape_cast %18 : vector<1x128xi1> to vector<1x128xi1>
    %39 = vector.broadcast %38 : vector<1x128xi1> to vector<8x128xi1>
    %40 = arith.select %39, %31, %34 : vector<8x128xi1>, vector<8x128xf32>
    %41 = vector.shape_cast %20 : vector<1x128xi1> to vector<1x128xi1>
    %42 = vector.broadcast %41 : vector<1x128xi1> to vector<8x128xi1>
    %43 = arith.select %42, %40, %35 : vector<8x128xi1>, vector<8x128xf32>
    %44 = vector.shape_cast %22 : vector<1x128xi1> to vector<1x128xi1>
    %45 = vector.broadcast %44 : vector<1x128xi1> to vector<8x128xi1>
    %46 = arith.select %45, %31, %36 : vector<8x128xi1>, vector<8x128xf32>
    %47 = vector.shape_cast %24 : vector<1x128xi1> to vector<1x128xi1>
    %48 = vector.broadcast %47 : vector<1x128xi1> to vector<8x128xi1>
    %49 = arith.select %48, %46, %37 : vector<8x128xi1>, vector<8x128xf32>
    %50 = tpu.concatenate %43, %40, %31, %46, %49, %29 in 0 : vector<8x128xf32>, vector<8x128xf32>, vector<8x128xf32>, vector<8x128xf32>, vector<8x128xf32>, vector<8x128xf32> -> vector<48x128xf32>
    %cst = arith.constant dense<0.000000e+00> : vector<8x128xf32>
    %51 = tpu.matmul %32, %50, %cst {dimension_numbers = #tpu.dot_dimension_numbers<[1], [0], [0], [1], [0, 0, 1, 1], [], []>} : vector<8x48xf32>, vector<48x128xf32>, vector<8x128xf32> -> vector<8x128xf32>
    %cst_15 = arith.constant 0.000000e+00 : f32
    %52 = vector.broadcast %cst_15 : f32 to vector<8x128xf32>
    %53 = arith.maximumf %51, %52 : vector<8x128xf32>
    %c1_i32_16 = arith.constant 1 : i32
    %54 = tpu.dynamic_rotate %53 by %c1_i32_16 dim 1 : vector<8x128xf32>, i32 -> vector<8x128xf32>
    %c2_i32_17 = arith.constant 2 : i32
    %55 = tpu.dynamic_rotate %53 by %c2_i32_17 dim 1 : vector<8x128xf32>, i32 -> vector<8x128xf32>
    %c127_i32_18 = arith.constant 127 : i32
    %56 = tpu.dynamic_rotate %53 by %c127_i32_18 dim 1 : vector<8x128xf32>, i32 -> vector<8x128xf32>
    %c126_i32_19 = arith.constant 126 : i32
    %57 = tpu.dynamic_rotate %53 by %c126_i32_19 dim 1 : vector<8x128xf32>, i32 -> vector<8x128xf32>
    %58 = vector.shape_cast %18 : vector<1x128xi1> to vector<1x128xi1>
    %59 = vector.broadcast %58 : vector<1x128xi1> to vector<8x128xi1>
    %60 = arith.select %59, %53, %54 : vector<8x128xi1>, vector<8x128xf32>
    %61 = vector.shape_cast %20 : vector<1x128xi1> to vector<1x128xi1>
    %62 = vector.broadcast %61 : vector<1x128xi1> to vector<8x128xi1>
    %63 = arith.select %62, %60, %55 : vector<8x128xi1>, vector<8x128xf32>
    %64 = vector.shape_cast %22 : vector<1x128xi1> to vector<1x128xi1>
    %65 = vector.broadcast %64 : vector<1x128xi1> to vector<8x128xi1>
    %66 = arith.select %65, %53, %56 : vector<8x128xi1>, vector<8x128xf32>
    %67 = vector.shape_cast %24 : vector<1x128xi1> to vector<1x128xi1>
    %68 = vector.broadcast %67 : vector<1x128xi1> to vector<8x128xi1>
    %69 = arith.select %68, %66, %57 : vector<8x128xi1>, vector<8x128xf32>
    %70 = tpu.concatenate %63, %60, %53, %66, %69, %31, %29 in 0 : vector<8x128xf32>, vector<8x128xf32>, vector<8x128xf32>, vector<8x128xf32>, vector<8x128xf32>, vector<8x128xf32>, vector<8x128xf32> -> vector<56x128xf32>
    %cst_20 = arith.constant dense<0.000000e+00> : vector<8x128xf32>
    %71 = tpu.matmul %33, %70, %cst_20 {dimension_numbers = #tpu.dot_dimension_numbers<[1], [0], [0], [1], [0, 0, 1, 1], [], []>} : vector<8x56xf32>, vector<56x128xf32>, vector<8x128xf32> -> vector<8x128xf32>
    %cst_21 = arith.constant 0.000000e+00 : f32
    %72 = vector.broadcast %cst_21 : f32 to vector<8x128xf32>
    %73 = arith.maximumf %71, %72 : vector<8x128xf32>
    %c1_i32_22 = arith.constant 1 : i32
    %74 = tpu.dynamic_rotate %73 by %c1_i32_22 dim 1 : vector<8x128xf32>, i32 -> vector<8x128xf32>
    %cst_23 = arith.constant 0.000000e+00 : f32
    %75 = vector.shape_cast %18 : vector<1x128xi1> to vector<1x128xi1>
    %76 = vector.broadcast %75 : vector<1x128xi1> to vector<8x128xi1>
    %77 = vector.broadcast %cst_23 : f32 to vector<8x128xf32>
    %78 = arith.select %76, %77, %74 : vector<8x128xi1>, vector<8x128xf32>
    %c127_i32_24 = arith.constant 127 : i32
    %79 = tpu.dynamic_rotate %73 by %c127_i32_24 dim 1 : vector<8x128xf32>, i32 -> vector<8x128xf32>
    %cst_25 = arith.constant 0.000000e+00 : f32
    %80 = vector.shape_cast %22 : vector<1x128xi1> to vector<1x128xi1>
    %81 = vector.broadcast %80 : vector<1x128xi1> to vector<8x128xi1>
    %82 = vector.broadcast %cst_25 : f32 to vector<8x128xf32>
    %83 = arith.select %81, %82, %79 : vector<8x128xi1>, vector<8x128xf32>
    %84 = arith.addf %78, %73 : vector<8x128xf32>
    %85 = arith.addf %84, %83 : vector<8x128xf32>
    %cst_26 = arith.constant 0.333333343 : f32
    %86 = vector.broadcast %cst_26 : f32 to vector<8x128xf32>
    %87 = arith.mulf %85, %86 : vector<8x128xf32>
    %c0_27 = arith.constant 0 : index
    %c0_28 = arith.constant 0 : index
    %88 = vector.load %arg4[%c0_27, %c0_28] : memref<16x48xf32, #tpu.memory_space<vmem>>, vector<16x48xf32>
    %c0_29 = arith.constant 0 : index
    %c0_30 = arith.constant 0 : index
    %89 = vector.load %arg5[%c0_29, %c0_30] : memref<16x96xf32, #tpu.memory_space<vmem>>, vector<16x96xf32>
    %c1_i32_31 = arith.constant 1 : i32
    %90 = tpu.dynamic_rotate %87 by %c1_i32_31 dim 1 : vector<8x128xf32>, i32 -> vector<8x128xf32>
    %c2_i32_32 = arith.constant 2 : i32
    %91 = tpu.dynamic_rotate %87 by %c2_i32_32 dim 1 : vector<8x128xf32>, i32 -> vector<8x128xf32>
    %c127_i32_33 = arith.constant 127 : i32
    %92 = tpu.dynamic_rotate %87 by %c127_i32_33 dim 1 : vector<8x128xf32>, i32 -> vector<8x128xf32>
    %c126_i32_34 = arith.constant 126 : i32
    %93 = tpu.dynamic_rotate %87 by %c126_i32_34 dim 1 : vector<8x128xf32>, i32 -> vector<8x128xf32>
    %94 = vector.shape_cast %18 : vector<1x128xi1> to vector<1x128xi1>
    %95 = vector.broadcast %94 : vector<1x128xi1> to vector<8x128xi1>
    %96 = arith.select %95, %87, %90 : vector<8x128xi1>, vector<8x128xf32>
    %97 = vector.shape_cast %20 : vector<1x128xi1> to vector<1x128xi1>
    %98 = vector.broadcast %97 : vector<1x128xi1> to vector<8x128xi1>
    %99 = arith.select %98, %96, %91 : vector<8x128xi1>, vector<8x128xf32>
    %100 = vector.shape_cast %22 : vector<1x128xi1> to vector<1x128xi1>
    %101 = vector.broadcast %100 : vector<1x128xi1> to vector<8x128xi1>
    %102 = arith.select %101, %87, %92 : vector<8x128xi1>, vector<8x128xf32>
    %103 = vector.shape_cast %24 : vector<1x128xi1> to vector<1x128xi1>
    %104 = vector.broadcast %103 : vector<1x128xi1> to vector<8x128xi1>
    %105 = arith.select %104, %102, %93 : vector<8x128xi1>, vector<8x128xf32>
    %106 = tpu.concatenate %99, %96, %87, %102, %105, %29 in 0 : vector<8x128xf32>, vector<8x128xf32>, vector<8x128xf32>, vector<8x128xf32>, vector<8x128xf32>, vector<8x128xf32> -> vector<48x128xf32>
    %cst_35 = arith.constant dense<0.000000e+00> : vector<16x128xf32>
    %107 = tpu.matmul %88, %106, %cst_35 {dimension_numbers = #tpu.dot_dimension_numbers<[1], [0], [0], [1], [0, 0, 1, 1], [], []>} : vector<16x48xf32>, vector<48x128xf32>, vector<16x128xf32> -> vector<16x128xf32>
    %cst_36 = arith.constant 0.000000e+00 : f32
    %108 = vector.broadcast %cst_36 : f32 to vector<16x128xf32>
    %109 = arith.maximumf %107, %108 : vector<16x128xf32>
    %c1_i32_37 = arith.constant 1 : i32
    %110 = tpu.dynamic_rotate %109 by %c1_i32_37 dim 1 : vector<16x128xf32>, i32 -> vector<16x128xf32>
    %c2_i32_38 = arith.constant 2 : i32
    %111 = tpu.dynamic_rotate %109 by %c2_i32_38 dim 1 : vector<16x128xf32>, i32 -> vector<16x128xf32>
    %c127_i32_39 = arith.constant 127 : i32
    %112 = tpu.dynamic_rotate %109 by %c127_i32_39 dim 1 : vector<16x128xf32>, i32 -> vector<16x128xf32>
    %c126_i32_40 = arith.constant 126 : i32
    %113 = tpu.dynamic_rotate %109 by %c126_i32_40 dim 1 : vector<16x128xf32>, i32 -> vector<16x128xf32>
    %114 = vector.shape_cast %18 : vector<1x128xi1> to vector<1x128xi1>
    %115 = vector.broadcast %114 : vector<1x128xi1> to vector<16x128xi1>
    %116 = arith.select %115, %109, %110 : vector<16x128xi1>, vector<16x128xf32>
    %117 = vector.shape_cast %20 : vector<1x128xi1> to vector<1x128xi1>
    %118 = vector.broadcast %117 : vector<1x128xi1> to vector<16x128xi1>
    %119 = arith.select %118, %116, %111 : vector<16x128xi1>, vector<16x128xf32>
    %120 = vector.shape_cast %22 : vector<1x128xi1> to vector<1x128xi1>
    %121 = vector.broadcast %120 : vector<1x128xi1> to vector<16x128xi1>
    %122 = arith.select %121, %109, %112 : vector<16x128xi1>, vector<16x128xf32>
    %123 = vector.shape_cast %24 : vector<1x128xi1> to vector<1x128xi1>
    %124 = vector.broadcast %123 : vector<1x128xi1> to vector<16x128xi1>
    %125 = arith.select %124, %122, %113 : vector<16x128xi1>, vector<16x128xf32>
    %126 = tpu.concatenate %119, %116, %109, %122, %125, %87, %29 in 0 : vector<16x128xf32>, vector<16x128xf32>, vector<16x128xf32>, vector<16x128xf32>, vector<16x128xf32>, vector<8x128xf32>, vector<8x128xf32> -> vector<96x128xf32>
    %cst_41 = arith.constant dense<0.000000e+00> : vector<16x128xf32>
    %127 = tpu.matmul %89, %126, %cst_41 {dimension_numbers = #tpu.dot_dimension_numbers<[1], [0], [0], [1], [0, 0, 1, 1], [], []>} : vector<16x96xf32>, vector<96x128xf32>, vector<16x128xf32> -> vector<16x128xf32>
    %cst_42 = arith.constant 0.000000e+00 : f32
    %128 = vector.broadcast %cst_42 : f32 to vector<16x128xf32>
    %129 = arith.maximumf %127, %128 : vector<16x128xf32>
    %c1_i32_43 = arith.constant 1 : i32
    %130 = tpu.dynamic_rotate %129 by %c1_i32_43 dim 1 : vector<16x128xf32>, i32 -> vector<16x128xf32>
    %cst_44 = arith.constant 0.000000e+00 : f32
    %131 = vector.shape_cast %18 : vector<1x128xi1> to vector<1x128xi1>
    %132 = vector.broadcast %131 : vector<1x128xi1> to vector<16x128xi1>
    %133 = vector.broadcast %cst_44 : f32 to vector<16x128xf32>
    %134 = arith.select %132, %133, %130 : vector<16x128xi1>, vector<16x128xf32>
    %c127_i32_45 = arith.constant 127 : i32
    %135 = tpu.dynamic_rotate %129 by %c127_i32_45 dim 1 : vector<16x128xf32>, i32 -> vector<16x128xf32>
    %cst_46 = arith.constant 0.000000e+00 : f32
    %136 = vector.shape_cast %22 : vector<1x128xi1> to vector<1x128xi1>
    %137 = vector.broadcast %136 : vector<1x128xi1> to vector<16x128xi1>
    %138 = vector.broadcast %cst_46 : f32 to vector<16x128xf32>
    %139 = arith.select %137, %138, %135 : vector<16x128xi1>, vector<16x128xf32>
    %140 = arith.addf %134, %129 : vector<16x128xf32>
    %141 = arith.addf %140, %139 : vector<16x128xf32>
    %cst_47 = arith.constant 0.333333343 : f32
    %142 = vector.broadcast %cst_47 : f32 to vector<16x128xf32>
    %143 = arith.mulf %141, %142 : vector<16x128xf32>
    %c0_48 = arith.constant 0 : index
    %c0_49 = arith.constant 0 : index
    %144 = vector.load %arg6[%c0_48, %c0_49] : memref<16x88xf32, #tpu.memory_space<vmem>>, vector<16x88xf32>
    %c0_50 = arith.constant 0 : index
    %c0_51 = arith.constant 0 : index
    %145 = vector.load %arg7[%c0_50, %c0_51] : memref<16x104xf32, #tpu.memory_space<vmem>>, vector<16x104xf32>
    %c1_i32_52 = arith.constant 1 : i32
    %146 = tpu.dynamic_rotate %143 by %c1_i32_52 dim 1 : vector<16x128xf32>, i32 -> vector<16x128xf32>
    %c2_i32_53 = arith.constant 2 : i32
    %147 = tpu.dynamic_rotate %143 by %c2_i32_53 dim 1 : vector<16x128xf32>, i32 -> vector<16x128xf32>
    %c127_i32_54 = arith.constant 127 : i32
    %148 = tpu.dynamic_rotate %143 by %c127_i32_54 dim 1 : vector<16x128xf32>, i32 -> vector<16x128xf32>
    %c126_i32_55 = arith.constant 126 : i32
    %149 = tpu.dynamic_rotate %143 by %c126_i32_55 dim 1 : vector<16x128xf32>, i32 -> vector<16x128xf32>
    %150 = vector.shape_cast %18 : vector<1x128xi1> to vector<1x128xi1>
    %151 = vector.broadcast %150 : vector<1x128xi1> to vector<16x128xi1>
    %152 = arith.select %151, %143, %146 : vector<16x128xi1>, vector<16x128xf32>
    %153 = vector.shape_cast %20 : vector<1x128xi1> to vector<1x128xi1>
    %154 = vector.broadcast %153 : vector<1x128xi1> to vector<16x128xi1>
    %155 = arith.select %154, %152, %147 : vector<16x128xi1>, vector<16x128xf32>
    %156 = vector.shape_cast %22 : vector<1x128xi1> to vector<1x128xi1>
    %157 = vector.broadcast %156 : vector<1x128xi1> to vector<16x128xi1>
    %158 = arith.select %157, %143, %148 : vector<16x128xi1>, vector<16x128xf32>
    %159 = vector.shape_cast %24 : vector<1x128xi1> to vector<1x128xi1>
    %160 = vector.broadcast %159 : vector<1x128xi1> to vector<16x128xi1>
    %161 = arith.select %160, %158, %149 : vector<16x128xi1>, vector<16x128xf32>
    %162 = tpu.concatenate %155, %152, %143, %158, %161, %29 in 0 : vector<16x128xf32>, vector<16x128xf32>, vector<16x128xf32>, vector<16x128xf32>, vector<16x128xf32>, vector<8x128xf32> -> vector<88x128xf32>
    %cst_56 = arith.constant dense<0.000000e+00> : vector<16x128xf32>
    %163 = tpu.matmul %144, %162, %cst_56 {dimension_numbers = #tpu.dot_dimension_numbers<[1], [0], [0], [1], [0, 0, 1, 1], [], []>} : vector<16x88xf32>, vector<88x128xf32>, vector<16x128xf32> -> vector<16x128xf32>
    %cst_57 = arith.constant 0.000000e+00 : f32
    %164 = vector.broadcast %cst_57 : f32 to vector<16x128xf32>
    %165 = arith.maximumf %163, %164 : vector<16x128xf32>
    %c1_i32_58 = arith.constant 1 : i32
    %166 = tpu.dynamic_rotate %165 by %c1_i32_58 dim 1 : vector<16x128xf32>, i32 -> vector<16x128xf32>
    %c2_i32_59 = arith.constant 2 : i32
    %167 = tpu.dynamic_rotate %165 by %c2_i32_59 dim 1 : vector<16x128xf32>, i32 -> vector<16x128xf32>
    %c127_i32_60 = arith.constant 127 : i32
    %168 = tpu.dynamic_rotate %165 by %c127_i32_60 dim 1 : vector<16x128xf32>, i32 -> vector<16x128xf32>
    %c126_i32_61 = arith.constant 126 : i32
    %169 = tpu.dynamic_rotate %165 by %c126_i32_61 dim 1 : vector<16x128xf32>, i32 -> vector<16x128xf32>
    %170 = vector.shape_cast %18 : vector<1x128xi1> to vector<1x128xi1>
    %171 = vector.broadcast %170 : vector<1x128xi1> to vector<16x128xi1>
    %172 = arith.select %171, %165, %166 : vector<16x128xi1>, vector<16x128xf32>
    %173 = vector.shape_cast %20 : vector<1x128xi1> to vector<1x128xi1>
    %174 = vector.broadcast %173 : vector<1x128xi1> to vector<16x128xi1>
    %175 = arith.select %174, %172, %167 : vector<16x128xi1>, vector<16x128xf32>
    %176 = vector.shape_cast %22 : vector<1x128xi1> to vector<1x128xi1>
    %177 = vector.broadcast %176 : vector<1x128xi1> to vector<16x128xi1>
    %178 = arith.select %177, %165, %168 : vector<16x128xi1>, vector<16x128xf32>
    %179 = vector.shape_cast %24 : vector<1x128xi1> to vector<1x128xi1>
    %180 = vector.broadcast %179 : vector<1x128xi1> to vector<16x128xi1>
    %181 = arith.select %180, %178, %169 : vector<16x128xi1>, vector<16x128xf32>
    %182 = tpu.concatenate %175, %172, %165, %178, %181, %143, %29 in 0 : vector<16x128xf32>, vector<16x128xf32>, vector<16x128xf32>, vector<16x128xf32>, vector<16x128xf32>, vector<16x128xf32>, vector<8x128xf32> -> vector<104x128xf32>
    %cst_62 = arith.constant dense<0.000000e+00> : vector<16x128xf32>
    %183 = tpu.matmul %145, %182, %cst_62 {dimension_numbers = #tpu.dot_dimension_numbers<[1], [0], [0], [1], [0, 0, 1, 1], [], []>} : vector<16x104xf32>, vector<104x128xf32>, vector<16x128xf32> -> vector<16x128xf32>
    %cst_63 = arith.constant 0.000000e+00 : f32
    %184 = vector.broadcast %cst_63 : f32 to vector<16x128xf32>
    %185 = arith.maximumf %183, %184 : vector<16x128xf32>
    %c1_i32_64 = arith.constant 1 : i32
    %186 = tpu.dynamic_rotate %185 by %c1_i32_64 dim 1 : vector<16x128xf32>, i32 -> vector<16x128xf32>
    %cst_65 = arith.constant 0.000000e+00 : f32
    %187 = vector.shape_cast %18 : vector<1x128xi1> to vector<1x128xi1>
    %188 = vector.broadcast %187 : vector<1x128xi1> to vector<16x128xi1>
    %189 = vector.broadcast %cst_65 : f32 to vector<16x128xf32>
    %190 = arith.select %188, %189, %186 : vector<16x128xi1>, vector<16x128xf32>
    %c127_i32_66 = arith.constant 127 : i32
    %191 = tpu.dynamic_rotate %185 by %c127_i32_66 dim 1 : vector<16x128xf32>, i32 -> vector<16x128xf32>
    %cst_67 = arith.constant 0.000000e+00 : f32
    %192 = vector.shape_cast %22 : vector<1x128xi1> to vector<1x128xi1>
    %193 = vector.broadcast %192 : vector<1x128xi1> to vector<16x128xi1>
    %194 = vector.broadcast %cst_67 : f32 to vector<16x128xf32>
    %195 = arith.select %193, %194, %191 : vector<16x128xi1>, vector<16x128xf32>
    %196 = arith.addf %190, %185 : vector<16x128xf32>
    %197 = arith.addf %196, %195 : vector<16x128xf32>
    %cst_68 = arith.constant 0.333333343 : f32
    %198 = vector.broadcast %cst_68 : f32 to vector<16x128xf32>
    %199 = arith.mulf %197, %198 : vector<16x128xf32>
    %c0_69 = arith.constant 0 : index
    %c0_70 = arith.constant 0 : index
    %200 = vector.load %arg8[%c0_69, %c0_70] : memref<8x88xf32, #tpu.memory_space<vmem>>, vector<8x88xf32>
    %c0_71 = arith.constant 0 : index
    %c0_72 = arith.constant 0 : index
    %201 = vector.load %arg9[%c0_71, %c0_72] : memref<8x64xf32, #tpu.memory_space<vmem>>, vector<8x64xf32>
    %c1_i32_73 = arith.constant 1 : i32
    %202 = tpu.dynamic_rotate %199 by %c1_i32_73 dim 1 : vector<16x128xf32>, i32 -> vector<16x128xf32>
    %c2_i32_74 = arith.constant 2 : i32
    %203 = tpu.dynamic_rotate %199 by %c2_i32_74 dim 1 : vector<16x128xf32>, i32 -> vector<16x128xf32>
    %c127_i32_75 = arith.constant 127 : i32
    %204 = tpu.dynamic_rotate %199 by %c127_i32_75 dim 1 : vector<16x128xf32>, i32 -> vector<16x128xf32>
    %c126_i32_76 = arith.constant 126 : i32
    %205 = tpu.dynamic_rotate %199 by %c126_i32_76 dim 1 : vector<16x128xf32>, i32 -> vector<16x128xf32>
    %206 = vector.shape_cast %18 : vector<1x128xi1> to vector<1x128xi1>
    %207 = vector.broadcast %206 : vector<1x128xi1> to vector<16x128xi1>
    %208 = arith.select %207, %199, %202 : vector<16x128xi1>, vector<16x128xf32>
    %209 = vector.shape_cast %20 : vector<1x128xi1> to vector<1x128xi1>
    %210 = vector.broadcast %209 : vector<1x128xi1> to vector<16x128xi1>
    %211 = arith.select %210, %208, %203 : vector<16x128xi1>, vector<16x128xf32>
    %212 = vector.shape_cast %22 : vector<1x128xi1> to vector<1x128xi1>
    %213 = vector.broadcast %212 : vector<1x128xi1> to vector<16x128xi1>
    %214 = arith.select %213, %199, %204 : vector<16x128xi1>, vector<16x128xf32>
    %215 = vector.shape_cast %24 : vector<1x128xi1> to vector<1x128xi1>
    %216 = vector.broadcast %215 : vector<1x128xi1> to vector<16x128xi1>
    %217 = arith.select %216, %214, %205 : vector<16x128xi1>, vector<16x128xf32>
    %218 = tpu.concatenate %211, %208, %199, %214, %217, %29 in 0 : vector<16x128xf32>, vector<16x128xf32>, vector<16x128xf32>, vector<16x128xf32>, vector<16x128xf32>, vector<8x128xf32> -> vector<88x128xf32>
    %cst_77 = arith.constant dense<0.000000e+00> : vector<8x128xf32>
    %219 = tpu.matmul %200, %218, %cst_77 {dimension_numbers = #tpu.dot_dimension_numbers<[1], [0], [0], [1], [0, 0, 1, 1], [], []>} : vector<8x88xf32>, vector<88x128xf32>, vector<8x128xf32> -> vector<8x128xf32>
    %cst_78 = arith.constant 0.000000e+00 : f32
    %220 = vector.broadcast %cst_78 : f32 to vector<8x128xf32>
    %221 = arith.maximumf %219, %220 : vector<8x128xf32>
    %c1_i32_79 = arith.constant 1 : i32
    %222 = tpu.dynamic_rotate %221 by %c1_i32_79 dim 1 : vector<8x128xf32>, i32 -> vector<8x128xf32>
    %c2_i32_80 = arith.constant 2 : i32
    %223 = tpu.dynamic_rotate %221 by %c2_i32_80 dim 1 : vector<8x128xf32>, i32 -> vector<8x128xf32>
    %c127_i32_81 = arith.constant 127 : i32
    %224 = tpu.dynamic_rotate %221 by %c127_i32_81 dim 1 : vector<8x128xf32>, i32 -> vector<8x128xf32>
    %c126_i32_82 = arith.constant 126 : i32
    %225 = tpu.dynamic_rotate %221 by %c126_i32_82 dim 1 : vector<8x128xf32>, i32 -> vector<8x128xf32>
    %226 = vector.shape_cast %18 : vector<1x128xi1> to vector<1x128xi1>
    %227 = vector.broadcast %226 : vector<1x128xi1> to vector<8x128xi1>
    %228 = arith.select %227, %221, %222 : vector<8x128xi1>, vector<8x128xf32>
    %229 = vector.shape_cast %20 : vector<1x128xi1> to vector<1x128xi1>
    %230 = vector.broadcast %229 : vector<1x128xi1> to vector<8x128xi1>
    %231 = arith.select %230, %228, %223 : vector<8x128xi1>, vector<8x128xf32>
    %232 = vector.shape_cast %22 : vector<1x128xi1> to vector<1x128xi1>
    %233 = vector.broadcast %232 : vector<1x128xi1> to vector<8x128xi1>
    %234 = arith.select %233, %221, %224 : vector<8x128xi1>, vector<8x128xf32>
    %235 = vector.shape_cast %24 : vector<1x128xi1> to vector<1x128xi1>
    %236 = vector.broadcast %235 : vector<1x128xi1> to vector<8x128xi1>
    %237 = arith.select %236, %234, %225 : vector<8x128xi1>, vector<8x128xf32>
    %238 = tpu.concatenate %231, %228, %221, %234, %237, %199, %29 in 0 : vector<8x128xf32>, vector<8x128xf32>, vector<8x128xf32>, vector<8x128xf32>, vector<8x128xf32>, vector<16x128xf32>, vector<8x128xf32> -> vector<64x128xf32>
    %cst_83 = arith.constant dense<0.000000e+00> : vector<8x128xf32>
    %239 = tpu.matmul %201, %238, %cst_83 {dimension_numbers = #tpu.dot_dimension_numbers<[1], [0], [0], [1], [0, 0, 1, 1], [], []>} : vector<8x64xf32>, vector<64x128xf32>, vector<8x128xf32> -> vector<8x128xf32>
    %cst_84 = arith.constant 0.000000e+00 : f32
    %240 = vector.broadcast %cst_84 : f32 to vector<8x128xf32>
    %241 = arith.maximumf %239, %240 : vector<8x128xf32>
    %c1_i32_85 = arith.constant 1 : i32
    %242 = tpu.dynamic_rotate %241 by %c1_i32_85 dim 1 : vector<8x128xf32>, i32 -> vector<8x128xf32>
    %cst_86 = arith.constant 0.000000e+00 : f32
    %243 = vector.shape_cast %18 : vector<1x128xi1> to vector<1x128xi1>
    %244 = vector.broadcast %243 : vector<1x128xi1> to vector<8x128xi1>
    %245 = vector.broadcast %cst_86 : f32 to vector<8x128xf32>
    %246 = arith.select %244, %245, %242 : vector<8x128xi1>, vector<8x128xf32>
    %c127_i32_87 = arith.constant 127 : i32
    %247 = tpu.dynamic_rotate %241 by %c127_i32_87 dim 1 : vector<8x128xf32>, i32 -> vector<8x128xf32>
    %cst_88 = arith.constant 0.000000e+00 : f32
    %248 = vector.shape_cast %22 : vector<1x128xi1> to vector<1x128xi1>
    %249 = vector.broadcast %248 : vector<1x128xi1> to vector<8x128xi1>
    %250 = vector.broadcast %cst_88 : f32 to vector<8x128xf32>
    %251 = arith.select %249, %250, %247 : vector<8x128xi1>, vector<8x128xf32>
    %252 = arith.addf %246, %241 : vector<8x128xf32>
    %253 = arith.addf %252, %251 : vector<8x128xf32>
    %cst_89 = arith.constant 0.333333343 : f32
    %254 = vector.broadcast %cst_89 : f32 to vector<8x128xf32>
    %255 = arith.mulf %253, %254 : vector<8x128xf32>
    %c0_90 = arith.constant 0 : index
    %c0_91 = arith.constant 0 : index
    %256 = vector.load %arg10[%c0_90, %c0_91] : memref<8x48xf32, #tpu.memory_space<vmem>>, vector<8x48xf32>
    %c0_92 = arith.constant 0 : index
    %c0_93 = arith.constant 0 : index
    %257 = vector.load %arg11[%c0_92, %c0_93] : memref<8x56xf32, #tpu.memory_space<vmem>>, vector<8x56xf32>
    %c1_i32_94 = arith.constant 1 : i32
    %258 = tpu.dynamic_rotate %255 by %c1_i32_94 dim 1 : vector<8x128xf32>, i32 -> vector<8x128xf32>
    %c2_i32_95 = arith.constant 2 : i32
    %259 = tpu.dynamic_rotate %255 by %c2_i32_95 dim 1 : vector<8x128xf32>, i32 -> vector<8x128xf32>
    %c127_i32_96 = arith.constant 127 : i32
    %260 = tpu.dynamic_rotate %255 by %c127_i32_96 dim 1 : vector<8x128xf32>, i32 -> vector<8x128xf32>
    %c126_i32_97 = arith.constant 126 : i32
    %261 = tpu.dynamic_rotate %255 by %c126_i32_97 dim 1 : vector<8x128xf32>, i32 -> vector<8x128xf32>
    %262 = vector.shape_cast %18 : vector<1x128xi1> to vector<1x128xi1>
    %263 = vector.broadcast %262 : vector<1x128xi1> to vector<8x128xi1>
    %264 = arith.select %263, %255, %258 : vector<8x128xi1>, vector<8x128xf32>
    %265 = vector.shape_cast %20 : vector<1x128xi1> to vector<1x128xi1>
    %266 = vector.broadcast %265 : vector<1x128xi1> to vector<8x128xi1>
    %267 = arith.select %266, %264, %259 : vector<8x128xi1>, vector<8x128xf32>
    %268 = vector.shape_cast %22 : vector<1x128xi1> to vector<1x128xi1>
    %269 = vector.broadcast %268 : vector<1x128xi1> to vector<8x128xi1>
    %270 = arith.select %269, %255, %260 : vector<8x128xi1>, vector<8x128xf32>
    %271 = vector.shape_cast %24 : vector<1x128xi1> to vector<1x128xi1>
    %272 = vector.broadcast %271 : vector<1x128xi1> to vector<8x128xi1>
    %273 = arith.select %272, %270, %261 : vector<8x128xi1>, vector<8x128xf32>
    %274 = tpu.concatenate %267, %264, %255, %270, %273, %29 in 0 : vector<8x128xf32>, vector<8x128xf32>, vector<8x128xf32>, vector<8x128xf32>, vector<8x128xf32>, vector<8x128xf32> -> vector<48x128xf32>
    %cst_98 = arith.constant dense<0.000000e+00> : vector<8x128xf32>
    %275 = tpu.matmul %256, %274, %cst_98 {dimension_numbers = #tpu.dot_dimension_numbers<[1], [0], [0], [1], [0, 0, 1, 1], [], []>} : vector<8x48xf32>, vector<48x128xf32>, vector<8x128xf32> -> vector<8x128xf32>
    %cst_99 = arith.constant 0.000000e+00 : f32
    %276 = vector.broadcast %cst_99 : f32 to vector<8x128xf32>
    %277 = arith.maximumf %275, %276 : vector<8x128xf32>
    %c1_i32_100 = arith.constant 1 : i32
    %278 = tpu.dynamic_rotate %277 by %c1_i32_100 dim 1 : vector<8x128xf32>, i32 -> vector<8x128xf32>
    %c2_i32_101 = arith.constant 2 : i32
    %279 = tpu.dynamic_rotate %277 by %c2_i32_101 dim 1 : vector<8x128xf32>, i32 -> vector<8x128xf32>
    %c127_i32_102 = arith.constant 127 : i32
    %280 = tpu.dynamic_rotate %277 by %c127_i32_102 dim 1 : vector<8x128xf32>, i32 -> vector<8x128xf32>
    %c126_i32_103 = arith.constant 126 : i32
    %281 = tpu.dynamic_rotate %277 by %c126_i32_103 dim 1 : vector<8x128xf32>, i32 -> vector<8x128xf32>
    %282 = vector.shape_cast %18 : vector<1x128xi1> to vector<1x128xi1>
    %283 = vector.broadcast %282 : vector<1x128xi1> to vector<8x128xi1>
    %284 = arith.select %283, %277, %278 : vector<8x128xi1>, vector<8x128xf32>
    %285 = vector.shape_cast %20 : vector<1x128xi1> to vector<1x128xi1>
    %286 = vector.broadcast %285 : vector<1x128xi1> to vector<8x128xi1>
    %287 = arith.select %286, %284, %279 : vector<8x128xi1>, vector<8x128xf32>
    %288 = vector.shape_cast %22 : vector<1x128xi1> to vector<1x128xi1>
    %289 = vector.broadcast %288 : vector<1x128xi1> to vector<8x128xi1>
    %290 = arith.select %289, %277, %280 : vector<8x128xi1>, vector<8x128xf32>
    %291 = vector.shape_cast %24 : vector<1x128xi1> to vector<1x128xi1>
    %292 = vector.broadcast %291 : vector<1x128xi1> to vector<8x128xi1>
    %293 = arith.select %292, %290, %281 : vector<8x128xi1>, vector<8x128xf32>
    %294 = tpu.concatenate %287, %284, %277, %290, %293, %255, %29 in 0 : vector<8x128xf32>, vector<8x128xf32>, vector<8x128xf32>, vector<8x128xf32>, vector<8x128xf32>, vector<8x128xf32>, vector<8x128xf32> -> vector<56x128xf32>
    %cst_104 = arith.constant dense<0.000000e+00> : vector<8x128xf32>
    %295 = tpu.matmul %257, %294, %cst_104 {dimension_numbers = #tpu.dot_dimension_numbers<[1], [0], [0], [1], [0, 0, 1, 1], [], []>} : vector<8x56xf32>, vector<56x128xf32>, vector<8x128xf32> -> vector<8x128xf32>
    %cst_105 = arith.constant 0.000000e+00 : f32
    %296 = vector.broadcast %cst_105 : f32 to vector<8x128xf32>
    %297 = arith.maximumf %295, %296 : vector<8x128xf32>
    %c1_i32_106 = arith.constant 1 : i32
    %298 = tpu.dynamic_rotate %297 by %c1_i32_106 dim 1 : vector<8x128xf32>, i32 -> vector<8x128xf32>
    %cst_107 = arith.constant 0.000000e+00 : f32
    %299 = vector.shape_cast %18 : vector<1x128xi1> to vector<1x128xi1>
    %300 = vector.broadcast %299 : vector<1x128xi1> to vector<8x128xi1>
    %301 = vector.broadcast %cst_107 : f32 to vector<8x128xf32>
    %302 = arith.select %300, %301, %298 : vector<8x128xi1>, vector<8x128xf32>
    %c127_i32_108 = arith.constant 127 : i32
    %303 = tpu.dynamic_rotate %297 by %c127_i32_108 dim 1 : vector<8x128xf32>, i32 -> vector<8x128xf32>
    %cst_109 = arith.constant 0.000000e+00 : f32
    %304 = vector.shape_cast %22 : vector<1x128xi1> to vector<1x128xi1>
    %305 = vector.broadcast %304 : vector<1x128xi1> to vector<8x128xi1>
    %306 = vector.broadcast %cst_109 : f32 to vector<8x128xf32>
    %307 = arith.select %305, %306, %303 : vector<8x128xi1>, vector<8x128xf32>
    %308 = arith.addf %302, %297 : vector<8x128xf32>
    %309 = arith.addf %308, %307 : vector<8x128xf32>
    %cst_110 = arith.constant 0.333333343 : f32
    %310 = vector.broadcast %cst_110 : f32 to vector<8x128xf32>
    %311 = arith.mulf %309, %310 : vector<8x128xf32>
    %c0_111 = arith.constant 0 : index
    %c0_112 = arith.constant 0 : index
    %c0_113 = arith.constant 0 : index
    %312 = vector.load %arg12[%c0_111, %c0_112, %c0_113] : memref<1x8x128xf32, #tpu.memory_space<vmem>>, vector<1x8x128xf32>
    %313 = vector.shape_cast %312 : vector<1x8x128xf32> to vector<8x128xf32>
    %314 = vector.shape_cast %311 : vector<8x128xf32> to vector<1x8x128xf32>
    tpu.vector_store %arg12[%c0_111, %c0_112, %c0_113], %314 {strides = array<i32>} : memref<1x8x128xf32, #tpu.memory_space<vmem>>, vector<1x8x128xf32>,
    return
  }
  func.func @transform_0(%arg0: i32) -> (i32, i32, i32) {
    %c0_i32 = arith.constant 0 : i32
    %c0_i32_0 = arith.constant 0 : i32
    %c0_i32_1 = arith.constant 0 : i32
    return %arg0, %c0_i32, %c0_i32_0 : i32, i32, i32
  }
  func.func @transform_1(%arg0: i32) -> (i32, i32) {
    %c0_i32 = arith.constant 0 : i32
    %c0_i32_0 = arith.constant 0 : i32
    %c0_i32_1 = arith.constant 0 : i32
    return %c0_i32, %c0_i32_0 : i32, i32
  }
  func.func @transform_2(%arg0: i32) -> (i32, i32) {
    %c0_i32 = arith.constant 0 : i32
    %c0_i32_0 = arith.constant 0 : i32
    %c0_i32_1 = arith.constant 0 : i32
    return %c0_i32, %c0_i32_0 : i32, i32
  }
  func.func @transform_3(%arg0: i32) -> (i32, i32) {
    %c0_i32 = arith.constant 0 : i32
    %c0_i32_0 = arith.constant 0 : i32
    %c0_i32_1 = arith.constant 0 : i32
    return %c0_i32, %c0_i32_0 : i32, i32
  }
  func.func @transform_4(%arg0: i32) -> (i32, i32) {
    %c0_i32 = arith.constant 0 : i32
    %c0_i32_0 = arith.constant 0 : i32
    %c0_i32_1 = arith.constant 0 : i32
    return %c0_i32, %c0_i32_0 : i32, i32
  }
  func.func @transform_5(%arg0: i32) -> (i32, i32) {
    %c0_i32 = arith.constant 0 : i32
    %c0_i32_0 = arith.constant 0 : i32
    %c0_i32_1 = arith.constant 0 : i32
    return %c0_i32, %c0_i32_0 : i32, i32
  }
  func.func @transform_6(%arg0: i32) -> (i32, i32) {
    %c0_i32 = arith.constant 0 : i32
    %c0_i32_0 = arith.constant 0 : i32
    %c0_i32_1 = arith.constant 0 : i32
    return %c0_i32, %c0_i32_0 : i32, i32
  }
  func.func @transform_7(%arg0: i32) -> (i32, i32) {
    %c0_i32 = arith.constant 0 : i32
    %c0_i32_0 = arith.constant 0 : i32
    %c0_i32_1 = arith.constant 0 : i32
    return %c0_i32, %c0_i32_0 : i32, i32
  }
  func.func @transform_8(%arg0: i32) -> (i32, i32) {
    %c0_i32 = arith.constant 0 : i32
    %c0_i32_0 = arith.constant 0 : i32
    %c0_i32_1 = arith.constant 0 : i32
    return %c0_i32, %c0_i32_0 : i32, i32
  }
  func.func @transform_9(%arg0: i32) -> (i32, i32) {
    %c0_i32 = arith.constant 0 : i32
    %c0_i32_0 = arith.constant 0 : i32
    %c0_i32_1 = arith.constant 0 : i32
    return %c0_i32, %c0_i32_0 : i32, i32
  }
  func.func @transform_10(%arg0: i32) -> (i32, i32) {
    %c0_i32 = arith.constant 0 : i32
    %c0_i32_0 = arith.constant 0 : i32
    %c0_i32_1 = arith.constant 0 : i32
    return %c0_i32, %c0_i32_0 : i32, i32
  }
  func.func @transform_11(%arg0: i32) -> (i32, i32, i32) {
    %c0_i32 = arith.constant 0 : i32
    %c0_i32_0 = arith.constant 0 : i32
    %c0_i32_1 = arith.constant 0 : i32
    return %arg0, %c0_i32, %c0_i32_0 : i32, i32, i32
  }
}

</mosaic_0001>

<llo_original>
// kernel: cnn1d_forward.1
$region0: #{cnn1d_forward.1}
  #allocation0 [shape = 'u32[]', space=smem, size = 0x4, offset = 0x4, fixed_abs, tag = 'smem constant byte address 0x4 - core index']
  #allocation1 [shape = 'u32[144,128]{1,0:T(1,128)}', space=vmem, size = 0x12000, scoped, tag = 'internal scratch']
  %s0 = inlined_call_operand.vmem [shape: f32[2,8,128], index: 0, kind: input, shape index: {}]
  %s1 = inlined_call_operand.hbm [shape: f32[8,48], index: 1, kind: input, shape index: {}]
  %s2 = inlined_call_operand.hbm [shape: f32[8,56], index: 2, kind: input, shape index: {}]
  %s3 = inlined_call_operand.vmem [shape: f32[16,48], index: 3, kind: input, shape index: {}]
  %s4 = inlined_call_operand.vmem [shape: f32[16,96], index: 4, kind: input, shape index: {}]
  %s5 = inlined_call_operand.hbm [shape: f32[16,88], index: 5, kind: input, shape index: {}]
  %s6 = inlined_call_operand.vmem [shape: f32[16,104], index: 6, kind: input, shape index: {}]
  %s7 = inlined_call_operand.hbm [shape: f32[8,88], index: 7, kind: input, shape index: {}]
  %s8 = inlined_call_operand.vmem [shape: f32[8,64], index: 8, kind: input, shape index: {}]
  %s9 = inlined_call_operand.hbm [shape: f32[8,48], index: 9, kind: input, shape index: {}]
  %s10 = inlined_call_operand.vmem [shape: f32[8,56], index: 10, kind: input, shape index: {}]
  %s11 = inlined_call_operand.vmem [shape: f32[2,8,128], index: 11, kind: output, shape index: {}]
  %s12 = sld [smem:[#allocation0]]
  $region97: #{cnn1d_forward.1} parent=0
    _
  %s14 = ssub.s32 1, %s12
  %s15 = scalar_select 0, %s14, %s12
  $region1: #{cnn1d_forward.1} parent=0
    #allocation2 [shape = 'u8[4096]{0}', space=vmem, size = 0x1000, scoped, tag = 'input window, operand 1, single buffered']
    #allocation3 [shape = 's32[2]{0}', space=sflag, size = 0x8, scoped, tag = 'scoped memory for cnn1d_forward.1']
    #allocation4 [shape = 'u8[4096]{0}', space=vmem, size = 0x1000, scoped, tag = 'input window, operand 2, single buffered']
    #allocation5 [shape = 's32[1]{0}', space=sflag, size = 0x4, scoped, tag = 'scoped memory for cnn1d_forward.1']
    #allocation6 [shape = 'u8[8192]{0}', space=vmem, size = 0x2000, scoped, tag = 'input window, operand 5, single buffered']
    #allocation7 [shape = 'u8[4096]{0}', space=vmem, size = 0x1000, scoped, tag = 'input window, operand 7, single buffered']
    #allocation8 [shape = 's32[1]{0}', space=sflag, size = 0x4, scoped, tag = 'scoped memory for cnn1d_forward.1']
    #allocation9 [shape = 'u8[4096]{0}', space=vmem, size = 0x1000, scoped, tag = 'input window, operand 9, single buffered']
    %16 = vsyncpa [#allocation3], 0
    %17 = vsyncpa [#allocation5], 0
    %18 = vsyncpa [#allocation8], 0
    loop: start=0, step=1, limit=4
    $region2: #{cnn1d_forward.1} parent=1 // loop_pre_header
      _
    $region3: #{cnn1d_forward.1} parent=1 // loop_header
      %s20 = sphi 0, %s24
      %p21 = scmp.ge.s32.totalorder %s20, 4
      %s30 = sphi 0, %s32
      %s33 = sphi 0, %s30
      %s34 = sphi 0, %s33
      %s50 = sphi 0, %s34
      %s54 = sphi 0, %s54
      %s56 = sphi 0, %s54
      %s57 = sphi 0, %s56
      %s71 = sphi 0, %s57
      %s75 = sphi 0, %s75
      %s77 = sphi 0, %s75
      %s78 = sphi 0, %s77
      %s92 = sphi 0, %s78
      %s96 = sphi 0, %s96
      %s98 = sphi 0, %s96
      %s99 = sphi 0, %s98
      %s113 = sphi 0, %s99
      %s117 = sphi 0, %s117
      %s119 = sphi 0, %s117
      %s120 = sphi 0, %s119
      %s134 = sphi 0, %s120
      %s138 = sphi 0, %s138
      %s140 = sphi 0, %s138
      %s141 = sphi 0, %s140
      %s155 = sphi 0, %s141
      %s159 = sphi 0, %s159
      %s161 = sphi 0, %s159
      %s162 = sphi 0, %s161
      %s176 = sphi 0, %s162
      %s180 = sphi 0, %s180
      %s182 = sphi 0, %s180
      %s183 = sphi 0, %s182
      %s197 = sphi 0, %s183
      %s201 = sphi 0, %s201
      %s203 = sphi 0, %s201
      %s204 = sphi 0, %s203
      %s218 = sphi 0, %s204
      %s222 = sphi 0, %s222
      %s224 = sphi 0, %s222
      %s225 = sphi 0, %s224
      %s239 = sphi 0, %s225
      %s243 = sphi 0, %s243
      %s245 = sphi 0, %s243
      %s246 = sphi 0, %s245
      %s260 = sphi 0, %s246
      %s266 = sphi 0, %s268
      %s269 = sphi 0, %s266
      %s270 = sphi 0, %s269
      %s286 = sphi 0, %s270
    $region4: #{cnn1d_forward.1} parent=1 // loop_header_branch
      %23 = sbr.rel (%p21) target = $region8
    $region5: #{cnn1d_forward.1} parent=1 // loop_body
      %s25 = ssub.s32 %s20, 1
      %s26 = ssub.s32 %s20, 2
      %s27 = sadd.s32 %s20, 1
      %s28 = ssub.s32 %s20, %s27
      %p29 = scmp.eq.s32.totalorder %s28, 0
      %s31 = sadd.s32 %s30, 1
      %s32 = scalar_select %p29, %s30, %s31
      %p35 = pneg %p29
      %p36 = scmp.eq.s32.totalorder %s20, 1
      %p37 = por %p35, %p36
      %p38 = scmp.ne.s32.totalorder %s30, %s33
      %p39 = scmp.eq.s32.totalorder %s20, 0
      %p40 = por %p38, %p39
      %p41 = scmp.ne.s32.totalorder %s30, %s33
      %p42 = scmp.eq.s32.totalorder %s25, 1
      %p43 = por %p41, %p42
      %p44 = scmp.ne.s32.totalorder %s33, %s34
      %p45 = scmp.eq.s32.totalorder %s25, 0
      %p46 = por %p44, %p45
      %p47 = scmp.ne.s32.totalorder %s33, %s34
      %p48 = scmp.eq.s32.totalorder %s26, 1
      %p49 = por %p47, %p48
      %p51 = scmp.ne.s32.totalorder %s34, %s50
      %p52 = scmp.eq.s32.totalorder %s26, 0
      %p53 = por %p51, %p52
      %s55 = sadd.s32 %s54, 1
      %p58 = scmp.eq.s32.totalorder %s20, 1
      %p59 = scmp.ne.s32.totalorder %s54, %s56
      %p60 = scmp.eq.s32.totalorder %s20, 0
      %p61 = por %p59, %p60
      %p62 = scmp.ne.s32.totalorder %s54, %s56
      %p63 = scmp.eq.s32.totalorder %s25, 1
      %p64 = por %p62, %p63
      %p65 = scmp.ne.s32.totalorder %s56, %s57
      %p66 = scmp.eq.s32.totalorder %s25, 0
      %p67 = por %p65, %p66
      %p68 = scmp.ne.s32.totalorder %s56, %s57
      %p69 = scmp.eq.s32.totalorder %s26, 1
      %p70 = por %p68, %p69
      %p72 = scmp.ne.s32.totalorder %s57, %s71
      %p73 = scmp.eq.s32.totalorder %s26, 0
      %p74 = por %p72, %p73
      %s76 = sadd.s32 %s75, 1
      %p79 = scmp.eq.s32.totalorder %s20, 1
      %p80 = scmp.ne.s32.totalorder %s75, %s77
      %p81 = scmp.eq.s32.totalorder %s20, 0
      %p82 = por %p80, %p81
      %p83 = scmp.ne.s32.totalorder %s75, %s77
      %p84 = scmp.eq.s32.totalorder %s25, 1
      %p85 = por %p83, %p84
      %p86 = scmp.ne.s32.totalorder %s77, %s78
      %p87 = scmp.eq.s32.totalorder %s25, 0
      %p88 = por %p86, %p87
      %p89 = scmp.ne.s32.totalorder %s77, %s78
      %p90 = scmp.eq.s32.totalorder %s26, 1
      %p91 = por %p89, %p90
      %p93 = scmp.ne.s32.totalorder %s78, %s92
      %p94 = scmp.eq.s32.totalorder %s26, 0
      %p95 = por %p93, %p94
      %s97 = sadd.s32 %s96, 1
      %p100 = scmp.eq.s32.totalorder %s20, 1
      %p101 = scmp.ne.s32.totalorder %s96, %s98
      %p102 = scmp.eq.s32.totalorder %s20, 0
      %p103 = por %p101, %p102
      %p104 = scmp.ne.s32.totalorder %s96, %s98
      %p105 = scmp.eq.s32.totalorder %s25, 1
      %p106 = por %p104, %p105
      %p107 = scmp.ne.s32.totalorder %s98, %s99
      %p108 = scmp.eq.s32.totalorder %s25, 0
      %p109 = por %p107, %p108
      %p110 = scmp.ne.s32.totalorder %s98, %s99
      %p111 = scmp.eq.s32.totalorder %s26, 1
      %p112 = por %p110, %p111
      %p114 = scmp.ne.s32.totalorder %s99, %s113
      %p115 = scmp.eq.s32.totalorder %s26, 0
      %p116 = por %p114, %p115
      %s118 = sadd.s32 %s117, 1
      %p121 = scmp.eq.s32.totalorder %s20, 1
      %p122 = scmp.ne.s32.totalorder %s117, %s119
      %p123 = scmp.eq.s32.totalorder %s20, 0
      %p124 = por %p122, %p123
      %p125 = scmp.ne.s32.totalorder %s117, %s119
      %p126 = scmp.eq.s32.totalorder %s25, 1
      %p127 = por %p125, %p126
      %p128 = scmp.ne.s32.totalorder %s119, %s120
      %p129 = scmp.eq.s32.totalorder %s25, 0
      %p130 = por %p128, %p129
      %p131 = scmp.ne.s32.totalorder %s119, %s120
      %p132 = scmp.eq.s32.totalorder %s26, 1
      %p133 = por %p131, %p132
      %p135 = scmp.ne.s32.totalorder %s120, %s134
      %p136 = scmp.eq.s32.totalorder %s26, 0
      %p137 = por %p135, %p136
      %s139 = sadd.s32 %s138, 1
      %p142 = scmp.eq.s32.totalorder %s20, 1
      %p143 = scmp.ne.s32.totalorder %s138, %s140
      %p144 = scmp.eq.s32.totalorder %s20, 0
      %p145 = por %p143, %p144
      %p146 = scmp.ne.s32.totalorder %s138, %s140
      %p147 = scmp.eq.s32.totalorder %s25, 1
      %p148 = por %p146, %p147
      %p149 = scmp.ne.s32.totalorder %s140, %s141
      %p150 = scmp.eq.s32.totalorder %s25, 0
      %p151 = por %p149, %p150
      %p152 = scmp.ne.s32.totalorder %s140, %s141
      %p153 = scmp.eq.s32.totalorder %s26, 1
      %p154 = por %p152, %p153
      %p156 = scmp.ne.s32.totalorder %s141, %s155
      %p157 = scmp.eq.s32.totalorder %s26, 0
      %p158 = por %p156, %p157
      %s160 = sadd.s32 %s159, 1
      %p163 = scmp.eq.s32.totalorder %s20, 1
      %p164 = scmp.ne.s32.totalorder %s159, %s161
      %p165 = scmp.eq.s32.totalorder %s20, 0
      %p166 = por %p164, %p165
      %p167 = scmp.ne.s32.totalorder %s159, %s161
      %p168 = scmp.eq.s32.totalorder %s25, 1
      %p169 = por %p167, %p168
      %p170 = scmp.ne.s32.totalorder %s161, %s162
      %p171 = scmp.eq.s32.totalorder %s25, 0
      %p172 = por %p170, %p171
      %p173 = scmp.ne.s32.totalorder %s161, %s162
      %p174 = scmp.eq.s32.totalorder %s26, 1
      %p175 = por %p173, %p174
      %p177 = scmp.ne.s32.totalorder %s162, %s176
      %p178 = scmp.eq.s32.totalorder %s26, 0
      %p179 = por %p177, %p178
      %s181 = sadd.s32 %s180, 1
      %p184 = scmp.eq.s32.totalorder %s20, 1
      %p185 = scmp.ne.s32.totalorder %s180, %s182
      %p186 = scmp.eq.s32.totalorder %s20, 0
      %p187 = por %p185, %p186
      %p188 = scmp.ne.s32.totalorder %s180, %s182
      %p189 = scmp.eq.s32.totalorder %s25, 1
      %p190 = por %p188, %p189
      %p191 = scmp.ne.s32.totalorder %s182, %s183
      %p192 = scmp.eq.s32.totalorder %s25, 0
      %p193 = por %p191, %p192
      %p194 = scmp.ne.s32.totalorder %s182, %s183
      %p195 = scmp.eq.s32.totalorder %s26, 1
      %p196 = por %p194, %p195
      %p198 = scmp.ne.s32.totalorder %s183, %s197
      %p199 = scmp.eq.s32.totalorder %s26, 0
      %p200 = por %p198, %p199
      %s202 = sadd.s32 %s201, 1
      %p205 = scmp.eq.s32.totalorder %s20, 1
      %p206 = scmp.ne.s32.totalorder %s201, %s203
      %p207 = scmp.eq.s32.totalorder %s20, 0
      %p208 = por %p206, %p207
      %p209 = scmp.ne.s32.totalorder %s201, %s203
      %p210 = scmp.eq.s32.totalorder %s25, 1
      %p211 = por %p209, %p210
      %p212 = scmp.ne.s32.totalorder %s203, %s204
      %p213 = scmp.eq.s32.totalorder %s25, 0
      %p214 = por %p212, %p213
      %p215 = scmp.ne.s32.totalorder %s203, %s204
      %p216 = scmp.eq.s32.totalorder %s26, 1
      %p217 = por %p215, %p216
      %p219 = scmp.ne.s32.totalorder %s204, %s218
      %p220 = scmp.eq.s32.totalorder %s26, 0
      %p221 = por %p219, %p220
      %s223 = sadd.s32 %s222, 1
      %p226 = scmp.eq.s32.totalorder %s20, 1
      %p227 = scmp.ne.s32.totalorder %s222, %s224
      %p228 = scmp.eq.s32.totalorder %s20, 0
      %p229 = por %p227, %p228
      %p230 = scmp.ne.s32.totalorder %s222, %s224
      %p231 = scmp.eq.s32.totalorder %s25, 1
      %p232 = por %p230, %p231
      %p233 = scmp.ne.s32.totalorder %s224, %s225
      %p234 = scmp.eq.s32.totalorder %s25, 0
      %p235 = por %p233, %p234
      %p236 = scmp.ne.s32.totalorder %s224, %s225
      %p237 = scmp.eq.s32.totalorder %s26, 1
      %p238 = por %p236, %p237
      %p240 = scmp.ne.s32.totalorder %s225, %s239
      %p241 = scmp.eq.s32.totalorder %s26, 0
      %p242 = por %p240, %p241
      %s244 = sadd.s32 %s243, 1
      %p247 = scmp.eq.s32.totalorder %s20, 1
      %p248 = scmp.ne.s32.totalorder %s243, %s245
      %p249 = scmp.eq.s32.totalorder %s20, 0
      %p250 = por %p248, %p249
      %p251 = scmp.ne.s32.totalorder %s243, %s245
      %p252 = scmp.eq.s32.totalorder %s25, 1
      %p253 = por %p251, %p252
      %p254 = scmp.ne.s32.totalorder %s245, %s246
      %p255 = scmp.eq.s32.totalorder %s25, 0
      %p256 = por %p254, %p255
      %p257 = scmp.ne.s32.totalorder %s245, %s246
      %p258 = scmp.eq.s32.totalorder %s26, 1
      %p259 = por %p257, %p258
      %p261 = scmp.ne.s32.totalorder %s246, %s260
      %p262 = scmp.eq.s32.totalorder %s26, 0
      %p263 = por %p261, %p262
      %s264 = ssub.s32 %s20, %s27
      %p265 = scmp.eq.s32.totalorder %s264, 0
      %s267 = sadd.s32 %s266, 1
      %s268 = scalar_select %p265, %s266, %s267
      %p271 = pneg %p265
      %p272 = scmp.eq.s32.totalorder %s20, 1
      %p273 = por %p271, %p272
      %p274 = scmp.ne.s32.totalorder %s266, %s269
      %p275 = scmp.eq.s32.totalorder %s20, 0
      %p276 = por %p274, %p275
      %p277 = scmp.ne.s32.totalorder %s266, %s269
      %p278 = scmp.eq.s32.totalorder %s25, 1
      %p279 = por %p277, %p278
      %p280 = scmp.ne.s32.totalorder %s269, %s270
      %p281 = scmp.eq.s32.totalorder %s25, 0
      %p282 = por %p280, %p281
      %p283 = scmp.ne.s32.totalorder %s269, %s270
      %p284 = scmp.eq.s32.totalorder %s26, 1
      %p285 = por %p283, %p284
      %p287 = scmp.ne.s32.totalorder %s270, %s286
      %p288 = scmp.eq.s32.totalorder %s26, 0
      %p289 = por %p287, %p288
      %p290 = scmp.le.s32.totalorder 1, %s20
      %p291 = scmp.lt.s32.totalorder %s20, 3
      %p292 = pnand %p290, %p291
      %p293 = pneg %p292
      // Predicated region
      $region9: #{cnn1d_forward.1} parent=5 // pred_check
        _
      $region10: #{cnn1d_forward.1} parent=5 // pred_check_branch
        %295 = sbr.rel (%p292) target = $region12
      $region11: #{cnn1d_forward.1} parent=5 // pred_region
        %s296 = ssub.s32 %s20, 1
        // Predicated region
        $region13: #{cnn1d_forward.1} parent=11 // pred_check
          %p297 = pneg %p67
        $region14: #{cnn1d_forward.1} parent=11 // pred_check_branch
          %299 = sbr.rel (%p297) target = $region16
        $region15: #{cnn1d_forward.1} parent=11 // pred_region
          %s301 = ssub.s32 128, 128
          %302 = vsyncadd [#allocation3], %s301
          %s304 = sshll.u32 [#allocation2], 4
          %s305 = int_to_ptr.vmem [resolvable:$true] %s304
          %307 = dma.hbm_to_vmem [thread:$0]  %s1, 128, %s305, [#allocation3]
        $region16: #{cnn1d_forward.1} parent=11 // pred_fallthru
          _
        // Predicated region
        $region17: #{cnn1d_forward.1} parent=11 // pred_check
          %p308 = pneg %p88
        $region18: #{cnn1d_forward.1} parent=11 // pred_check_branch
          %310 = sbr.rel (%p308) target = $region20
        $region19: #{cnn1d_forward.1} parent=11 // pred_region
          %s312 = ssub.s32 128, 128
          %313 = vsyncadd [#allocation5], %s312
          %s315 = sshll.u32 [#allocation4], 4
          %s316 = int_to_ptr.vmem [resolvable:$true] %s315
          %318 = dma.hbm_to_vmem [thread:$0]  %s2, 128, %s316, [#allocation5]
        $region20: #{cnn1d_forward.1} parent=11 // pred_fallthru
          _
        // Predicated region
        $region21: #{cnn1d_forward.1} parent=11 // pred_check
          %p319 = pneg %p109
        $region22: #{cnn1d_forward.1} parent=11 // pred_check_branch
          %321 = sbr.rel (%p319) target = $region24
        $region23: #{cnn1d_forward.1} parent=11 // pred_region
          _
        $region24: #{cnn1d_forward.1} parent=11 // pred_fallthru
          _
        // Predicated region
        $region25: #{cnn1d_forward.1} parent=11 // pred_check
          %p322 = pneg %p130
        $region26: #{cnn1d_forward.1} parent=11 // pred_check_branch
          %324 = sbr.rel (%p322) target = $region28
        $region27: #{cnn1d_forward.1} parent=11 // pred_region
          _
        $region28: #{cnn1d_forward.1} parent=11 // pred_fallthru
          _
        // Predicated region
        $region29: #{cnn1d_forward.1} parent=11 // pred_check
          %p325 = pneg %p151
        $region30: #{cnn1d_forward.1} parent=11 // pred_check_branch
          %327 = sbr.rel (%p325) target = $region32
        $region31: #{cnn1d_forward.1} parent=11 // pred_region
          %s329 = ssub.s32 256, 256
          %330 = vsyncadd [#allocation5], %s329
          %s331 = sshll.u32 [#allocation6], 4
          %s332 = int_to_ptr.vmem [resolvable:$true] %s331
          %337 = dma.hbm_to_vmem [thread:$0]  %s5, 256, %s332, [#allocation5], 128, 128, 8
        $region32: #{cnn1d_forward.1} parent=11 // pred_fallthru
          _
        // Predicated region
        $region33: #{cnn1d_forward.1} parent=11 // pred_check
          %p338 = pneg %p172
        $region34: #{cnn1d_forward.1} parent=11 // pred_check_branch
          %340 = sbr.rel (%p338) target = $region36
        $region35: #{cnn1d_forward.1} parent=11 // pred_region
          _
        $region36: #{cnn1d_forward.1} parent=11 // pred_fallthru
          _
        // Predicated region
        $region37: #{cnn1d_forward.1} parent=11 // pred_check
          %p341 = pneg %p193
        $region38: #{cnn1d_forward.1} parent=11 // pred_check_branch
          %343 = sbr.rel (%p341) target = $region40
        $region39: #{cnn1d_forward.1} parent=11 // pred_region
          %s345 = ssub.s32 128, 128
          %346 = vsyncadd [#allocation8], %s345
          %s348 = sshll.u32 [#allocation7], 4
          %s349 = int_to_ptr.vmem [resolvable:$true] %s348
          %351 = dma.hbm_to_vmem [thread:$0]  %s7, 128, %s349, [#allocation8]
        $region40: #{cnn1d_forward.1} parent=11 // pred_fallthru
          _
        // Predicated region
        $region41: #{cnn1d_forward.1} parent=11 // pred_check
          %p352 = pneg %p214
        $region42: #{cnn1d_forward.1} parent=11 // pred_check_branch
          %354 = sbr.rel (%p352) target = $region44
        $region43: #{cnn1d_forward.1} parent=11 // pred_region
          _
        $region44: #{cnn1d_forward.1} parent=11 // pred_fallthru
          _
        // Predicated region
        $region45: #{cnn1d_forward.1} parent=11 // pred_check
          %p355 = pneg %p235
        $region46: #{cnn1d_forward.1} parent=11 // pred_check_branch
          %357 = sbr.rel (%p355) target = $region48
        $region47: #{cnn1d_forward.1} parent=11 // pred_region
          %s359 = ssub.s32 128, 128
          %360 = vsyncadd [#allocation8], %s359
          %s362 = sshll.u32 [#allocation9], 4
          %s363 = int_to_ptr.vmem [resolvable:$true] %s362
          %365 = dma.hbm_to_vmem [thread:$0]  %s9, 128, %s363, [#allocation8]
        $region48: #{cnn1d_forward.1} parent=11 // pred_fallthru
          _
        // Predicated region
        $region49: #{cnn1d_forward.1} parent=11 // pred_check
          %p366 = pneg %p256
        $region50: #{cnn1d_forward.1} parent=11 // pred_check_branch
          %368 = sbr.rel (%p366) target = $region52
        $region51: #{cnn1d_forward.1} parent=11 // pred_region
          _
        $region52: #{cnn1d_forward.1} parent=11 // pred_fallthru
          _
      $region12: #{cnn1d_forward.1} parent=5 // pred_fallthru
        _
      %p369 = scmp.lt.s32.totalorder %s20, 2
      // Predicated region
      $region53: #{cnn1d_forward.1} parent=5 // pred_check
        %p370 = pneg %p369
      $region54: #{cnn1d_forward.1} parent=5 // pred_check_branch
        %372 = sbr.rel (%p370) target = $region56
      $region55: #{cnn1d_forward.1} parent=5 // pred_region
        // Predicated region
        $region57: #{cnn1d_forward.1} parent=55 // pred_check
          %p373 = pneg %p40
        $region58: #{cnn1d_forward.1} parent=55 // pred_check_branch
          %375 = sbr.rel (%p373) target = $region60
        $region59: #{cnn1d_forward.1} parent=55 // pred_region
          %p376 = scmp.lt.s32.totalorder %s20, 1
          %s377 = scalar_select %p376, %s20, 1
          %s378 = smul.addr %s377, 8
          %s379 = scalar_lea.vmem %s0, %s378
        $region60: #{cnn1d_forward.1} parent=55 // pred_fallthru
          _
      $region56: #{cnn1d_forward.1} parent=5 // pred_fallthru
        _
      %p380 = scmp.le.s32.totalorder 1, %s20
      %p381 = scmp.lt.s32.totalorder %s20, 3
      %p382 = pnand %p380, %p381
      %p383 = pneg %p382
      // Predicated region
      $region61: #{cnn1d_forward.1} parent=5 // pred_check
        _
      $region62: #{cnn1d_forward.1} parent=5 // pred_check_branch
        %385 = sbr.rel (%p382) target = $region64
      $region63: #{cnn1d_forward.1} parent=5 // pred_region
        %s386 = ssub.s32 %s20, 1
        // Predicated region
        $region65: #{cnn1d_forward.1} parent=63 // pred_check
          %p387 = pneg %p67
        $region66: #{cnn1d_forward.1} parent=63 // pred_check_branch
          %389 = sbr.rel (%p387) target = $region68
        $region67: #{cnn1d_forward.1} parent=63 // pred_region
          %390 = dma.done [#allocation3], 128
        $region68: #{cnn1d_forward.1} parent=63 // pred_fallthru
          _
        // Predicated region
        $region69: #{cnn1d_forward.1} parent=63 // pred_check
          %p391 = pneg %p88
        $region70: #{cnn1d_forward.1} parent=63 // pred_check_branch
          %393 = sbr.rel (%p391) target = $region72
        $region71: #{cnn1d_forward.1} parent=63 // pred_region
          %394 = dma.done [#allocation5], 128
        $region72: #{cnn1d_forward.1} parent=63 // pred_fallthru
          _
        // Predicated region
        $region73: #{cnn1d_forward.1} parent=63 // pred_check
          %p395 = pneg %p151
        $region74: #{cnn1d_forward.1} parent=63 // pred_check_branch
          %397 = sbr.rel (%p395) target = $region76
        $region75: #{cnn1d_forward.1} parent=63 // pred_region
          %398 = dma.done [#allocation5], 256
        $region76: #{cnn1d_forward.1} parent=63 // pred_fallthru
          _
        // Predicated region
        $region77: #{cnn1d_forward.1} parent=63 // pred_check
          %p399 = pneg %p193
        $region78: #{cnn1d_forward.1} parent=63 // pred_check_branch
          %401 = sbr.rel (%p399) target = $region80
        $region79: #{cnn1d_forward.1} parent=63 // pred_region
          %402 = dma.done [#allocation8], 128
        $region80: #{cnn1d_forward.1} parent=63 // pred_fallthru
          _
        // Predicated region
        $region81: #{cnn1d_forward.1} parent=63 // pred_check
          %p403 = pneg %p235
        $region82: #{cnn1d_forward.1} parent=63 // pred_check_branch
          %405 = sbr.rel (%p403) target = $region84
        $region83: #{cnn1d_forward.1} parent=63 // pred_region
          %406 = dma.done [#allocation8], 128
        $region84: #{cnn1d_forward.1} parent=63 // pred_fallthru
          _
        %p407 = scmp.lt.s32.totalorder %s25, 1
        %s408 = scalar_select %p407, %s25, 1
        %s409 = smul.addr %s408, 8
        %s410 = scalar_lea.vmem %s0, %s409
        %p411 = pneg %p46
        %p412 = pneg %p43
        %p413 = pneg %p67
        %p414 = pneg %p64
        %p415 = pneg %p88
        %p416 = pneg %p85
        %p417 = pneg %p109
        %p418 = pneg %p106
        %p419 = pneg %p130
        %p420 = pneg %p127
        %p421 = pneg %p151
        %p422 = pneg %p148
        %p423 = pneg %p172
        %p424 = pneg %p169
        %p425 = pneg %p193
        %p426 = pneg %p190
        %p427 = pneg %p214
        %p428 = pneg %p211
        %p429 = pneg %p235
        %p430 = pneg %p232
        %p431 = pneg %p256
        %p432 = pneg %p253
        %p433 = pneg %p282
        %p434 = pneg %p279
        %p435 = scmp.lt.s32.totalorder %s25, 1
        %s436 = scalar_select %p435, %s25, 1
        %s437 = smul.addr %s436, 8
        %s438 = scalar_lea.vmem %s11, %s437
        %p439 = scmp.lt.s32.totalorder %s25, 1
        %s440 = scalar_select %p439, %s25, 1
        %s441 = smul.addr %s440, 8
        %s442 = scalar_lea.vmem %s0, %s441
        %p443 = scmp.lt.s32.totalorder %s25, 1
        %s444 = scalar_select %p443, %s25, 1
        %s445 = smul.addr %s444, 8
        %s446 = scalar_lea.vmem %s11, %s445
        %v447 = vlaneseq
        %v448 = vand.u32 %v447, 127
        %vm449 = vcmp.lt.s32.totalorder %v448, 0
        %v450 = vsub.s32 0, %v448
        %v451 = vsel %vm449, %v450, %v448
        %v452 = vshrl.u32 %v451, 7
        %v453 = vand.u32 %v451, 127
        %v454 = vsub.s32 0, %v453
        %v455 = vsel %vm449, %v454, %v453
        %vm456 = vcmp.ne.s32.totalorder %v455, 0
        %vm457 = vcmp.lt.s32.totalorder %v455, 0
        %vm458 = vmand %vm457, %vm456
        %v459 = vadd.s32 %v455, 128
        %v460 = vsel %vm458, %v459, %v455
        %vm461 = vcmp.eq.s32.totalorder %v460, 0
        %vm462 = vcmp.le.s32.totalorder %v460, 1
        %vm463 = vcmp.eq.s32.totalorder %v460, 127
        %vm464 = vcmp.ge.s32.totalorder %v460, 126
        %v465 = vlaneseq
        %v466 = vshrl.u32 %v465, 7
        %vm467 = vcmp.eq.s32.totalorder %v466, 0
        %v468 = vsel %vm467, 1, 0
        %v469 = vcvt.s32.f32 %v468
        %v470 = vld [vmem:[%s442] sm:$0xff]
        %v471 = vld [vmem:[#allocation2] sm:$0xff]
        %v472 = vld [vmem:[#allocation4] sm:$0xff]
        %473 = vrot.lane.b32.xlu0 %v470, 1
        %v474 = vpop.permute.xlu0 %473
        %475 = vrot.lane.b32.xlu0 %v470, 2
        %v476 = vpop.permute.xlu0 %475
        %477 = vrot.lane.b32.xlu0 %v470, 127
        %v478 = vpop.permute.xlu0 %477
        %479 = vrot.lane.b32.xlu0 %v470, 126
        %v480 = vpop.permute.xlu0 %479
        %v481 = vsel %vm461, 1, 0
        %vm482 = vcmp.eq.s32.totalorder %v481, 1
        %v483 = vsel %vm482, %v470, %v474
        %v484 = vsel %vm462, 1, 0
        %vm485 = vcmp.eq.s32.totalorder %v484, 1
        %v486 = vsel %vm485, %v483, %v476
        %v487 = vsel %vm463, 1, 0
        %vm488 = vcmp.eq.s32.totalorder %v487, 1
        %v489 = vsel %vm488, %v470, %v478
        %v490 = vsel %vm464, 1, 0
        %vm491 = vcmp.eq.s32.totalorder %v490, 1
        %v492 = vsel %vm491, %v489, %v480
        %vm493 = vcmask 392192
        %v495 = vsel %vm493, %v471, 0
        %497 = vmatprep.subr.mxu0 0.0
        %498 = vmatpush1.msra.mxu0 %v486
        %499 = vmatprep.subr.mxu0 0.0
        %500 = vmatpush1.msra.mxu0 %v483
        %501 = vmatprep.subr.mxu0 0.0
        %502 = vmatpush1.msra.mxu0 %v470
        %503 = vmatprep.subr.mxu0 0.0
        %504 = vmatpush1.msra.mxu0 %v489
        %505 = vmatprep.subr.mxu0 0.0
        %506 = vmatpush1.msra.mxu0 %v492
        %507 = vmatprep.subr.mxu0 0.0
        %508 = vmatpush1.msra.mxu0 %v469
        %509 = vmatprep.subr.mxu0 0.0
        %510 = vmatpush1.msra.mxu0 0.0
        %511 = vmatprep.subr.mxu0 0.0
        %512 = vmatpush1.msra.mxu0 0.0
        %513 = vmatprep.subr.mxu0 0.0
        %514 = vmatpush1.msra.mxu0 0.0
        %515 = vmatprep.subr.mxu0 0.0
        %516 = vmatpush1.msra.mxu0 0.0
        %517 = vmatprep.subr.mxu0 0.0
        %518 = vmatpush1.msra.mxu0 0.0
        %519 = vmatprep.subr.mxu0 0.0
        %520 = vmatpush1.msra.mxu0 0.0
        %521 = vmatprep.subr.mxu0 0.0
        %522 = vmatpush1.msra.mxu0 0.0
        %523 = vmatprep.subr.mxu0 0.0
        %524 = vmatpush1.msra.mxu0 0.0
        %525 = vmatprep.subr.mxu0 0.0
        %526 = vmatpush1.msra.mxu0 0.0
        %527 = vmatprep.subr.mxu0 0.0
        %528 = vmatpush1.msra.mxu0 0.0
        %529 = vmatprep.subr.mxu0 0.0
        %530 = vmatpush1.msra.mxu0 0.0
        %531 = vmatprep.subr.mxu0 0.0
        %532 = vmatpush1.msra.mxu0 0.0
        %533 = vmatprep.subr.mxu0 0.0
        %534 = vmatpush1.msra.mxu0 0.0
        %535 = vmatprep.subr.mxu0 0.0
        %536 = vmatpush1.msra.mxu0 0.0
        %537 = vmatprep.subr.mxu0 0.0
        %538 = vmatpush1.msra.mxu0 0.0
        %539 = vmatprep.subr.mxu0 0.0
        %540 = vmatpush1.msra.mxu0 0.0
        %541 = vmatprep.subr.mxu0 0.0
        %542 = vmatpush1.msra.mxu0 0.0
        %543 = vmatprep.subr.mxu0 0.0
        %544 = vmatpush1.msra.mxu0 0.0
        %545 = vmatprep.subr.mxu0 0.0
        %546 = vmatpush1.msra.mxu0 0.0
        %547 = vmatprep.subr.mxu0 0.0
        %548 = vmatpush1.msra.mxu0 0.0
        %549 = vmatprep.subr.mxu0 0.0
        %550 = vmatpush1.msra.mxu0 0.0
        %551 = vmatprep.subr.mxu0 0.0
        %552 = vmatpush1.msra.mxu0 0.0
        %553 = vmatprep.subr.mxu0 0.0
        %554 = vmatpush1.msra.mxu0 0.0
        %555 = vmatprep.subr.mxu0 0.0
        %556 = vmatpush1.msra.mxu0 0.0
        %557 = vmatprep.subr.mxu0 0.0
        %558 = vmatpush1.msra.mxu0 0.0
        %559 = vmatprep.subr.mxu0 0.0
        %560 = vmatpush1.msra.mxu0 0.0
        %561 = vmatprep.mubr.f32.mxu0 0.0
        %562 = vmatmul.mubr.f32.gmra.mrb[0].mxu0 %v495
        %v563 = vpop.f32.mrb[0].mxu0
        %v564 = vadd.f32 0.0, %v563
        %v565 = vpop.f32.mrb[0].mxu0
        %566 = vdwg.mxu0
        %v567 = vmax.f32 %v564, 0.0
        %568 = vrot.lane.b32.xlu0 %v567, 1
        %v569 = vpop.permute.xlu0 %568
        %570 = vrot.lane.b32.xlu0 %v567, 2
        %v571 = vpop.permute.xlu0 %570
        %572 = vrot.lane.b32.xlu0 %v567, 127
        %v573 = vpop.permute.xlu0 %572
        %574 = vrot.lane.b32.xlu0 %v567, 126
        %v575 = vpop.permute.xlu0 %574
        %v576 = vsel %vm482, %v567, %v569
        %v577 = vsel %vm485, %v576, %v571
        %v578 = vsel %vm488, %v567, %v573
        %v579 = vsel %vm491, %v578, %v575
        %vm580 = vcmask 457728
        %v582 = vsel %vm580, %v472, 0
        %584 = vmatprep.subr.mxu0 0.0
        %585 = vmatpush1.msra.mxu0 %v577
        %586 = vmatprep.subr.mxu0 0.0
        %587 = vmatpush1.msra.mxu0 %v576
        %588 = vmatprep.subr.mxu0 0.0
        %589 = vmatpush1.msra.mxu0 %v567
        %590 = vmatprep.subr.mxu0 0.0
        %591 = vmatpush1.msra.mxu0 %v578
        %592 = vmatprep.subr.mxu0 0.0
        %593 = vmatpush1.msra.mxu0 %v579
        %594 = vmatprep.subr.mxu0 0.0
        %595 = vmatpush1.msra.mxu0 %v470
        %596 = vmatprep.subr.mxu0 0.0
        %597 = vmatpush1.msra.mxu0 %v469
        %598 = vmatprep.subr.mxu0 0.0
        %599 = vmatpush1.msra.mxu0 0.0
        %600 = vmatprep.subr.mxu0 0.0
        %601 = vmatpush1.msra.mxu0 0.0
        %602 = vmatprep.subr.mxu0 0.0
        %603 = vmatpush1.msra.mxu0 0.0
        %604 = vmatprep.subr.mxu0 0.0
        %605 = vmatpush1.msra.mxu0 0.0
        %606 = vmatprep.subr.mxu0 0.0
        %607 = vmatpush1.msra.mxu0 0.0
        %608 = vmatprep.subr.mxu0 0.0
        %609 = vmatpush1.msra.mxu0 0.0
        %610 = vmatprep.subr.mxu0 0.0
        %611 = vmatpush1.msra.mxu0 0.0
        %612 = vmatprep.subr.mxu0 0.0
        %613 = vmatpush1.msra.mxu0 0.0
        %614 = vmatprep.subr.mxu0 0.0
        %615 = vmatpush1.msra.mxu0 0.0
        %616 = vmatprep.subr.mxu0 0.0
        %617 = vmatpush1.msra.mxu0 0.0
        %618 = vmatprep.subr.mxu0 0.0
        %619 = vmatpush1.msra.mxu0 0.0
        %620 = vmatprep.subr.mxu0 0.0
        %621 = vmatpush1.msra.mxu0 0.0
        %622 = vmatprep.subr.mxu0 0.0
        %623 = vmatpush1.msra.mxu0 0.0
        %624 = vmatprep.subr.mxu0 0.0
        %625 = vmatpush1.msra.mxu0 0.0
        %626 = vmatprep.subr.mxu0 0.0
        %627 = vmatpush1.msra.mxu0 0.0
        %628 = vmatprep.subr.mxu0 0.0
        %629 = vmatpush1.msra.mxu0 0.0
        %630 = vmatprep.subr.mxu0 0.0
        %631 = vmatpush1.msra.mxu0 0.0
        %632 = vmatprep.subr.mxu0 0.0
        %633 = vmatpush1.msra.mxu0 0.0
        %634 = vmatprep.subr.mxu0 0.0
        %635 = vmatpush1.msra.mxu0 0.0
        %636 = vmatprep.subr.mxu0 0.0
        %637 = vmatpush1.msra.mxu0 0.0
        %638 = vmatprep.subr.mxu0 0.0
        %639 = vmatpush1.msra.mxu0 0.0
        %640 = vmatprep.subr.mxu0 0.0
        %641 = vmatpush1.msra.mxu0 0.0
        %642 = vmatprep.subr.mxu0 0.0
        %643 = vmatpush1.msra.mxu0 0.0
        %644 = vmatprep.subr.mxu0 0.0
        %645 = vmatpush1.msra.mxu0 0.0
        %646 = vmatprep.subr.mxu0 0.0
        %647 = vmatpush1.msra.mxu0 0.0
        %648 = vmatprep.mubr.f32.mxu0 0.0
        %649 = vmatmul.mubr.f32.gmra.mrb[0].mxu0 %v582
        %v650 = vpop.f32.mrb[0].mxu0
        %v651 = vadd.f32 0.0, %v650
        %v652 = vpop.f32.mrb[0].mxu0
        %653 = vdwg.mxu0
        %v654 = vmax.f32 %v651, 0.0
        %655 = vrot.lane.b32.xlu0 %v654, 1
        %v656 = vpop.permute.xlu0 %655
        %v657 = vsel %vm482, 0.0, %v656
        %658 = vrot.lane.b32.xlu0 %v654, 127
        %v659 = vpop.permute.xlu0 %658
        %v660 = vsel %vm488, 0.0, %v659
        %v661 = vadd.f32 %v657, %v654
        %v662 = vadd.f32 %v661, %v660
        %v663 = vmul.f32 %v662, 0.33333334
        %v664 = vld [vmem:[%s3] sm:$0xff]
        %v665 = vld [vmem:[%s3 + $0x8] sm:$0xff]
        %v666 = vld [vmem:[%s4] sm:$0xff]
        %v667 = vld [vmem:[%s4 + $0x8] sm:$0xff]
        %668 = vrot.lane.b32.xlu0 %v663, 1
        %v669 = vpop.permute.xlu0 %668
        %670 = vrot.lane.b32.xlu0 %v663, 2
        %v671 = vpop.permute.xlu0 %670
        %672 = vrot.lane.b32.xlu0 %v663, 127
        %v673 = vpop.permute.xlu0 %672
        %674 = vrot.lane.b32.xlu0 %v663, 126
        %v675 = vpop.permute.xlu0 %674
        %v676 = vsel %vm482, %v663, %v669
        %v677 = vsel %vm485, %v676, %v671
        %v678 = vsel %vm488, %v663, %v673
        %v679 = vsel %vm491, %v678, %v675
        %v681 = vsel %vm493, %v664, 0
        %v684 = vsel %vm493, %v665, 0
        %686 = vmatprep.subr.mxu0 0.0
        %687 = vmatpush1.msra.mxu0 %v677
        %688 = vmatprep.subr.mxu0 0.0
        %689 = vmatpush1.msra.mxu0 %v676
        %690 = vmatprep.subr.mxu0 0.0
        %691 = vmatpush1.msra.mxu0 %v663
        %692 = vmatprep.subr.mxu0 0.0
        %693 = vmatpush1.msra.mxu0 %v678
        %694 = vmatprep.subr.mxu0 0.0
        %695 = vmatpush1.msra.mxu0 %v679
        %696 = vmatprep.subr.mxu0 0.0
        %697 = vmatpush1.msra.mxu0 %v469
        %698 = vmatprep.subr.mxu0 0.0
        %699 = vmatpush1.msra.mxu0 0.0
        %700 = vmatprep.subr.mxu0 0.0
        %701 = vmatpush1.msra.mxu0 0.0
        %702 = vmatprep.subr.mxu0 0.0
        %703 = vmatpush1.msra.mxu0 0.0
        %704 = vmatprep.subr.mxu0 0.0
        %705 = vmatpush1.msra.mxu0 0.0
        %706 = vmatprep.subr.mxu0 0.0
        %707 = vmatpush1.msra.mxu0 0.0
        %708 = vmatprep.subr.mxu0 0.0
        %709 = vmatpush1.msra.mxu0 0.0
        %710 = vmatprep.subr.mxu0 0.0
        %711 = vmatpush1.msra.mxu0 0.0
        %712 = vmatprep.subr.mxu0 0.0
        %713 = vmatpush1.msra.mxu0 0.0
        %714 = vmatprep.subr.mxu0 0.0
        %715 = vmatpush1.msra.mxu0 0.0
        %716 = vmatprep.subr.mxu0 0.0
        %717 = vmatpush1.msra.mxu0 0.0
        %718 = vmatprep.subr.mxu0 0.0
        %719 = vmatpush1.msra.mxu0 0.0
        %720 = vmatprep.subr.mxu0 0.0
        %721 = vmatpush1.msra.mxu0 0.0
        %722 = vmatprep.subr.mxu0 0.0
        %723 = vmatpush1.msra.mxu0 0.0
        %724 = vmatprep.subr.mxu0 0.0
        %725 = vmatpush1.msra.mxu0 0.0
        %726 = vmatprep.subr.mxu0 0.0
        %727 = vmatpush1.msra.mxu0 0.0
        %728 = vmatprep.subr.mxu0 0.0
        %729 = vmatpush1.msra.mxu0 0.0
        %730 = vmatprep.subr.mxu0 0.0
        %731 = vmatpush1.msra.mxu0 0.0
        %732 = vmatprep.subr.mxu0 0.0
        %733 = vmatpush1.msra.mxu0 0.0
        %734 = vmatprep.subr.mxu0 0.0
        %735 = vmatpush1.msra.mxu0 0.0
        %736 = vmatprep.subr.mxu0 0.0
        %737 = vmatpush1.msra.mxu0 0.0
        %738 = vmatprep.subr.mxu0 0.0
        %739 = vmatpush1.msra.mxu0 0.0
        %740 = vmatprep.subr.mxu0 0.0
        %741 = vmatpush1.msra.mxu0 0.0
        %742 = vmatprep.subr.mxu0 0.0
        %743 = vmatpush1.msra.mxu0 0.0
        %744 = vmatprep.subr.mxu0 0.0
        %745 = vmatpush1.msra.mxu0 0.0
        %746 = vmatprep.subr.mxu0 0.0
        %747 = vmatpush1.msra.mxu0 0.0
        %748 = vmatprep.subr.mxu0 0.0
        %749 = vmatpush1.msra.mxu0 0.0
        %750 = vmatprep.mubr.f32.mxu0 0.0
        %751 = vmatmul.mubr.f32.gmra.mrb[0].mxu0 %v681
        %v752 = vpop.f32.mrb[0].mxu0
        %v753 = vadd.f32 0.0, %v752
        %v754 = vpop.f32.mrb[0].mxu0
        %755 = vmatprep.mubr.f32.mxu0 0.0
        %756 = vmatmul.mubr.f32.gmra.mrb[0].mxu0 %v684
        %v757 = vpop.f32.mrb[0].mxu0
        %v758 = vadd.f32 0.0, %v757
        %v759 = vpop.f32.mrb[0].mxu0
        %760 = vdwg.mxu0
        %v761 = vmax.f32 %v753, 0.0
        %v762 = vmax.f32 %v758, 0.0
        %763 = vrot.lane.b32.xlu0 %v761, 1
        %v764 = vpop.permute.xlu0 %763
        %765 = vrot.lane.b32.xlu0 %v762, 1
        %v766 = vpop.permute.xlu0 %765
        %767 = vrot.lane.b32.xlu0 %v761, 2
        %v768 = vpop.permute.xlu0 %767
        %769 = vrot.lane.b32.xlu0 %v762, 2
        %v770 = vpop.permute.xlu0 %769
        %771 = vrot.lane.b32.xlu0 %v761, 127
        %v772 = vpop.permute.xlu0 %771
        %773 = vrot.lane.b32.xlu0 %v762, 127
        %v774 = vpop.permute.xlu0 %773
        %775 = vrot.lane.b32.xlu0 %v761, 126
        %v776 = vpop.permute.xlu0 %775
        %777 = vrot.lane.b32.xlu0 %v762, 126
        %v778 = vpop.permute.xlu0 %777
        %v779 = vsel %vm482, %v761, %v764
        %v780 = vsel %vm482, %v762, %v766
        %v781 = vsel %vm485, %v779, %v768
        %v782 = vsel %vm485, %v780, %v770
        %v783 = vsel %vm488, %v761, %v772
        %v784 = vsel %vm488, %v762, %v774
        %v785 = vsel %vm491, %v783, %v776
        %v786 = vsel %vm491, %v784, %v778
        %vm787 = vcmask 785408
        %v789 = vsel %vm787, %v666, 0
        %v792 = vsel %vm787, %v667, 0
        %794 = vmatprep.subr.mxu0 0.0
        %795 = vmatpush1.msra.mxu0 %v781
        %796 = vmatprep.subr.mxu0 0.0
        %797 = vmatpush1.msra.mxu0 %v782
        %798 = vmatprep.subr.mxu0 0.0
        %799 = vmatpush1.msra.mxu0 %v779
        %800 = vmatprep.subr.mxu0 0.0
        %801 = vmatpush1.msra.mxu0 %v780
        %802 = vmatprep.subr.mxu0 0.0
        %803 = vmatpush1.msra.mxu0 %v761
        %804 = vmatprep.subr.mxu0 0.0
        %805 = vmatpush1.msra.mxu0 %v762
        %806 = vmatprep.subr.mxu0 0.0
        %807 = vmatpush1.msra.mxu0 %v783
        %808 = vmatprep.subr.mxu0 0.0
        %809 = vmatpush1.msra.mxu0 %v784
        %810 = vmatprep.subr.mxu0 0.0
        %811 = vmatpush1.msra.mxu0 %v785
        %812 = vmatprep.subr.mxu0 0.0
        %813 = vmatpush1.msra.mxu0 %v786
        %814 = vmatprep.subr.mxu0 0.0
        %815 = vmatpush1.msra.mxu0 %v663
        %816 = vmatprep.subr.mxu0 0.0
        %817 = vmatpush1.msra.mxu0 %v469
        %818 = vmatprep.subr.mxu0 0.0
        %819 = vmatpush1.msra.mxu0 0.0
        %820 = vmatprep.subr.mxu0 0.0
        %821 = vmatpush1.msra.mxu0 0.0
        %822 = vmatprep.subr.mxu0 0.0
        %823 = vmatpush1.msra.mxu0 0.0
        %824 = vmatprep.subr.mxu0 0.0
        %825 = vmatpush1.msra.mxu0 0.0
        %826 = vmatprep.subr.mxu0 0.0
        %827 = vmatpush1.msra.mxu0 0.0
        %828 = vmatprep.subr.mxu0 0.0
        %829 = vmatpush1.msra.mxu0 0.0
        %830 = vmatprep.subr.mxu0 0.0
        %831 = vmatpush1.msra.mxu0 0.0
        %832 = vmatprep.subr.mxu0 0.0
        %833 = vmatpush1.msra.mxu0 0.0
        %834 = vmatprep.subr.mxu0 0.0
        %835 = vmatpush1.msra.mxu0 0.0
        %836 = vmatprep.subr.mxu0 0.0
        %837 = vmatpush1.msra.mxu0 0.0
        %838 = vmatprep.subr.mxu0 0.0
        %839 = vmatpush1.msra.mxu0 0.0
        %840 = vmatprep.subr.mxu0 0.0
        %841 = vmatpush1.msra.mxu0 0.0
        %842 = vmatprep.subr.mxu0 0.0
        %843 = vmatpush1.msra.mxu0 0.0
        %844 = vmatprep.subr.mxu0 0.0
        %845 = vmatpush1.msra.mxu0 0.0
        %846 = vmatprep.subr.mxu0 0.0
        %847 = vmatpush1.msra.mxu0 0.0
        %848 = vmatprep.subr.mxu0 0.0
        %849 = vmatpush1.msra.mxu0 0.0
        %850 = vmatprep.subr.mxu0 0.0
        %851 = vmatpush1.msra.mxu0 0.0
        %852 = vmatprep.subr.mxu0 0.0
        %853 = vmatpush1.msra.mxu0 0.0
        %854 = vmatprep.subr.mxu0 0.0
        %855 = vmatpush1.msra.mxu0 0.0
        %856 = vmatprep.subr.mxu0 0.0
        %857 = vmatpush1.msra.mxu0 0.0
        %858 = vmatprep.mubr.f32.mxu0 0.0
        %859 = vmatmul.mubr.f32.gmra.mrb[0].mxu0 %v789
        %v860 = vpop.f32.mrb[0].mxu0
        %v861 = vadd.f32 0.0, %v860
        %v862 = vpop.f32.mrb[0].mxu0
        %863 = vmatprep.mubr.f32.mxu0 0.0
        %864 = vmatmul.mubr.f32.gmra.mrb[0].mxu0 %v792
        %v865 = vpop.f32.mrb[0].mxu0
        %v866 = vadd.f32 0.0, %v865
        %v867 = vpop.f32.mrb[0].mxu0
        %868 = vdwg.mxu0
        %v869 = vmax.f32 %v861, 0.0
        %v870 = vmax.f32 %v866, 0.0
        %871 = vrot.lane.b32.xlu0 %v869, 1
        %v872 = vpop.permute.xlu0 %871
        %873 = vrot.lane.b32.xlu0 %v870, 1
        %v874 = vpop.permute.xlu0 %873
        %v875 = vsel %vm482, 0.0, %v872
        %v876 = vsel %vm482, 0.0, %v874
        %877 = vrot.lane.b32.xlu0 %v869, 127
        %v878 = vpop.permute.xlu0 %877
        %879 = vrot.lane.b32.xlu0 %v870, 127
        %v880 = vpop.permute.xlu0 %879
        %v881 = vsel %vm488, 0.0, %v878
        %v882 = vsel %vm488, 0.0, %v880
        %v883 = vadd.f32 %v875, %v869
        %v884 = vadd.f32 %v876, %v870
        %v885 = vadd.f32 %v883, %v881
        %v886 = vadd.f32 %v884, %v882
        %v887 = vmul.f32 %v885, 0.33333334
        %v888 = vmul.f32 %v886, 0.33333334
        %v889 = vld [vmem:[#allocation6] sm:$0xff]
        %v890 = vld [vmem:[#allocation6 + $0x8] sm:$0xff]
        %v891 = vld [vmem:[%s6] sm:$0xff]
        %v892 = vld [vmem:[%s6 + $0x8] sm:$0xff]
        %893 = vrot.lane.b32.xlu0 %v887, 1
        %v894 = vpop.permute.xlu0 %893
        %895 = vrot.lane.b32.xlu0 %v888, 1
        %v896 = vpop.permute.xlu0 %895
        %897 = vrot.lane.b32.xlu0 %v887, 2
        %v898 = vpop.permute.xlu0 %897
        %899 = vrot.lane.b32.xlu0 %v888, 2
        %v900 = vpop.permute.xlu0 %899
        %901 = vrot.lane.b32.xlu0 %v887, 127
        %v902 = vpop.permute.xlu0 %901
        %903 = vrot.lane.b32.xlu0 %v888, 127
        %v904 = vpop.permute.xlu0 %903
        %905 = vrot.lane.b32.xlu0 %v887, 126
        %v906 = vpop.permute.xlu0 %905
        %907 = vrot.lane.b32.xlu0 %v888, 126
        %v908 = vpop.permute.xlu0 %907
        %v909 = vsel %vm482, %v887, %v894
        %v910 = vsel %vm482, %v888, %v896
        %v911 = vsel %vm485, %v909, %v898
        %v912 = vsel %vm485, %v910, %v900
        %v913 = vsel %vm488, %v887, %v902
        %v914 = vsel %vm488, %v888, %v904
        %v915 = vsel %vm491, %v913, %v906
        %v916 = vsel %vm491, %v914, %v908
        %vm917 = vcmask 719872
        %v919 = vsel %vm917, %v889, 0
        %v922 = vsel %vm917, %v890, 0
        %924 = vmatprep.subr.mxu0 0.0
        %925 = vmatpush1.msra.mxu0 %v911
        %926 = vmatprep.subr.mxu0 0.0
        %927 = vmatpush1.msra.mxu0 %v912
        %928 = vmatprep.subr.mxu0 0.0
        %929 = vmatpush1.msra.mxu0 %v909
        %930 = vmatprep.subr.mxu0 0.0
        %931 = vmatpush1.msra.mxu0 %v910
        %932 = vmatprep.subr.mxu0 0.0
        %933 = vmatpush1.msra.mxu0 %v887
        %934 = vmatprep.subr.mxu0 0.0
        %935 = vmatpush1.msra.mxu0 %v888
        %936 = vmatprep.subr.mxu0 0.0
        %937 = vmatpush1.msra.mxu0 %v913
        %938 = vmatprep.subr.mxu0 0.0
        %939 = vmatpush1.msra.mxu0 %v914
        %940 = vmatprep.subr.mxu0 0.0
        %941 = vmatpush1.msra.mxu0 %v915
        %942 = vmatprep.subr.mxu0 0.0
        %943 = vmatpush1.msra.mxu0 %v916
        %944 = vmatprep.subr.mxu0 0.0
        %945 = vmatpush1.msra.mxu0 %v469
        %946 = vmatprep.subr.mxu0 0.0
        %947 = vmatpush1.msra.mxu0 0.0
        %948 = vmatprep.subr.mxu0 0.0
        %949 = vmatpush1.msra.mxu0 0.0
        %950 = vmatprep.subr.mxu0 0.0
        %951 = vmatpush1.msra.mxu0 0.0
        %952 = vmatprep.subr.mxu0 0.0
        %953 = vmatpush1.msra.mxu0 0.0
        %954 = vmatprep.subr.mxu0 0.0
        %955 = vmatpush1.msra.mxu0 0.0
        %956 = vmatprep.subr.mxu0 0.0
        %957 = vmatpush1.msra.mxu0 0.0
        %958 = vmatprep.subr.mxu0 0.0
        %959 = vmatpush1.msra.mxu0 0.0
        %960 = vmatprep.subr.mxu0 0.0
        %961 = vmatpush1.msra.mxu0 0.0
        %962 = vmatprep.subr.mxu0 0.0
        %963 = vmatpush1.msra.mxu0 0.0
        %964 = vmatprep.subr.mxu0 0.0
        %965 = vmatpush1.msra.mxu0 0.0
        %966 = vmatprep.subr.mxu0 0.0
        %967 = vmatpush1.msra.mxu0 0.0
        %968 = vmatprep.subr.mxu0 0.0
        %969 = vmatpush1.msra.mxu0 0.0
        %970 = vmatprep.subr.mxu0 0.0
        %971 = vmatpush1.msra.mxu0 0.0
        %972 = vmatprep.subr.mxu0 0.0
        %973 = vmatpush1.msra.mxu0 0.0
        %974 = vmatprep.subr.mxu0 0.0
        %975 = vmatpush1.msra.mxu0 0.0
        %976 = vmatprep.subr.mxu0 0.0
        %977 = vmatpush1.msra.mxu0 0.0
        %978 = vmatprep.subr.mxu0 0.0
        %979 = vmatpush1.msra.mxu0 0.0
        %980 = vmatprep.subr.mxu0 0.0
        %981 = vmatpush1.msra.mxu0 0.0
        %982 = vmatprep.subr.mxu0 0.0
        %983 = vmatpush1.msra.mxu0 0.0
        %984 = vmatprep.subr.mxu0 0.0
        %985 = vmatpush1.msra.mxu0 0.0
        %986 = vmatprep.subr.mxu0 0.0
        %987 = vmatpush1.msra.mxu0 0.0
        %988 = vmatprep.mubr.f32.mxu0 0.0
        %989 = vmatmul.mubr.f32.gmra.mrb[0].mxu0 %v919
        %v990 = vpop.f32.mrb[0].mxu0
        %v991 = vadd.f32 0.0, %v990
        %v992 = vpop.f32.mrb[0].mxu0
        %993 = vmatprep.mubr.f32.mxu0 0.0
        %994 = vmatmul.mubr.f32.gmra.mrb[0].mxu0 %v922
        %v995 = vpop.f32.mrb[0].mxu0
        %v996 = vadd.f32 0.0, %v995
        %v997 = vpop.f32.mrb[0].mxu0
        %998 = vdwg.mxu0
        %v999 = vmax.f32 %v991, 0.0
        %v1000 = vmax.f32 %v996, 0.0
        %1001 = vrot.lane.b32.xlu0 %v999, 1
        %v1002 = vpop.permute.xlu0 %1001
        %1003 = vrot.lane.b32.xlu0 %v1000, 1
        %v1004 = vpop.permute.xlu0 %1003
        %1005 = vrot.lane.b32.xlu0 %v999, 2
        %v1006 = vpop.permute.xlu0 %1005
        %1007 = vrot.lane.b32.xlu0 %v1000, 2
        %v1008 = vpop.permute.xlu0 %1007
        %1009 = vrot.lane.b32.xlu0 %v999, 127
        %v1010 = vpop.permute.xlu0 %1009
        %1011 = vrot.lane.b32.xlu0 %v1000, 127
        %v1012 = vpop.permute.xlu0 %1011
        %1013 = vrot.lane.b32.xlu0 %v999, 126
        %v1014 = vpop.permute.xlu0 %1013
        %1015 = vrot.lane.b32.xlu0 %v1000, 126
        %v1016 = vpop.permute.xlu0 %1015
        %v1017 = vsel %vm482, %v999, %v1002
        %v1018 = vsel %vm482, %v1000, %v1004
        %v1019 = vsel %vm485, %v1017, %v1006
        %v1020 = vsel %vm485, %v1018, %v1008
        %v1021 = vsel %vm488, %v999, %v1010
        %v1022 = vsel %vm488, %v1000, %v1012
        %v1023 = vsel %vm491, %v1021, %v1014
        %v1024 = vsel %vm491, %v1022, %v1016
        %vm1025 = vcmask 850944
        %v1027 = vsel %vm1025, %v891, 0
        %v1030 = vsel %vm1025, %v892, 0
        %1032 = vmatprep.subr.mxu0 0.0
        %1033 = vmatpush1.msra.mxu0 %v1019
        %1034 = vmatprep.subr.mxu0 0.0
        %1035 = vmatpush1.msra.mxu0 %v1020
        %1036 = vmatprep.subr.mxu0 0.0
        %1037 = vmatpush1.msra.mxu0 %v1017
        %1038 = vmatprep.subr.mxu0 0.0
        %1039 = vmatpush1.msra.mxu0 %v1018
        %1040 = vmatprep.subr.mxu0 0.0
        %1041 = vmatpush1.msra.mxu0 %v999
        %1042 = vmatprep.subr.mxu0 0.0
        %1043 = vmatpush1.msra.mxu0 %v1000
        %1044 = vmatprep.subr.mxu0 0.0
        %1045 = vmatpush1.msra.mxu0 %v1021
        %1046 = vmatprep.subr.mxu0 0.0
        %1047 = vmatpush1.msra.mxu0 %v1022
        %1048 = vmatprep.subr.mxu0 0.0
        %1049 = vmatpush1.msra.mxu0 %v1023
        %1050 = vmatprep.subr.mxu0 0.0
        %1051 = vmatpush1.msra.mxu0 %v1024
        %1052 = vmatprep.subr.mxu0 0.0
        %1053 = vmatpush1.msra.mxu0 %v887
        %1054 = vmatprep.subr.mxu0 0.0
        %1055 = vmatpush1.msra.mxu0 %v888
        %1056 = vmatprep.subr.mxu0 0.0
        %1057 = vmatpush1.msra.mxu0 %v469
        %1058 = vmatprep.subr.mxu0 0.0
        %1059 = vmatpush1.msra.mxu0 0.0
        %1060 = vmatprep.subr.mxu0 0.0
        %1061 = vmatpush1.msra.mxu0 0.0
        %1062 = vmatprep.subr.mxu0 0.0
        %1063 = vmatpush1.msra.mxu0 0.0
        %1064 = vmatprep.subr.mxu0 0.0
        %1065 = vmatpush1.msra.mxu0 0.0
        %1066 = vmatprep.subr.mxu0 0.0
        %1067 = vmatpush1.msra.mxu0 0.0
        %1068 = vmatprep.subr.mxu0 0.0
        %1069 = vmatpush1.msra.mxu0 0.0
        %1070 = vmatprep.subr.mxu0 0.0
        %1071 = vmatpush1.msra.mxu0 0.0
        %1072 = vmatprep.subr.mxu0 0.0
        %1073 = vmatpush1.msra.mxu0 0.0
        %1074 = vmatprep.subr.mxu0 0.0
        %1075 = vmatpush1.msra.mxu0 0.0
        %1076 = vmatprep.subr.mxu0 0.0
        %1077 = vmatpush1.msra.mxu0 0.0
        %1078 = vmatprep.subr.mxu0 0.0
        %1079 = vmatpush1.msra.mxu0 0.0
        %1080 = vmatprep.subr.mxu0 0.0
        %1081 = vmatpush1.msra.mxu0 0.0
        %1082 = vmatprep.subr.mxu0 0.0
        %1083 = vmatpush1.msra.mxu0 0.0
        %1084 = vmatprep.subr.mxu0 0.0
        %1085 = vmatpush1.msra.mxu0 0.0
        %1086 = vmatprep.subr.mxu0 0.0
        %1087 = vmatpush1.msra.mxu0 0.0
        %1088 = vmatprep.subr.mxu0 0.0
        %1089 = vmatpush1.msra.mxu0 0.0
        %1090 = vmatprep.subr.mxu0 0.0
        %1091 = vmatpush1.msra.mxu0 0.0
        %1092 = vmatprep.subr.mxu0 0.0
        %1093 = vmatpush1.msra.mxu0 0.0
        %1094 = vmatprep.subr.mxu0 0.0
        %1095 = vmatpush1.msra.mxu0 0.0
        %1096 = vmatprep.mubr.f32.mxu0 0.0
        %1097 = vmatmul.mubr.f32.gmra.mrb[0].mxu0 %v1027
        %v1098 = vpop.f32.mrb[0].mxu0
        %v1099 = vadd.f32 0.0, %v1098
        %v1100 = vpop.f32.mrb[0].mxu0
        %1101 = vmatprep.mubr.f32.mxu0 0.0
        %1102 = vmatmul.mubr.f32.gmra.mrb[0].mxu0 %v1030
        %v1103 = vpop.f32.mrb[0].mxu0
        %v1104 = vadd.f32 0.0, %v1103
        %v1105 = vpop.f32.mrb[0].mxu0
        %1106 = vdwg.mxu0
        %v1107 = vmax.f32 %v1099, 0.0
        %v1108 = vmax.f32 %v1104, 0.0
        %1109 = vrot.lane.b32.xlu0 %v1107, 1
        %v1110 = vpop.permute.xlu0 %1109
        %1111 = vrot.lane.b32.xlu0 %v1108, 1
        %v1112 = vpop.permute.xlu0 %1111
        %v1113 = vsel %vm482, 0.0, %v1110
        %v1114 = vsel %vm482, 0.0, %v1112
        %1115 = vrot.lane.b32.xlu0 %v1107, 127
        %v1116 = vpop.permute.xlu0 %1115
        %1117 = vrot.lane.b32.xlu0 %v1108, 127
        %v1118 = vpop.permute.xlu0 %1117
        %v1119 = vsel %vm488, 0.0, %v1116
        %v1120 = vsel %vm488, 0.0, %v1118
        %v1121 = vadd.f32 %v1113, %v1107
        %v1122 = vadd.f32 %v1114, %v1108
        %v1123 = vadd.f32 %v1121, %v1119
        %v1124 = vadd.f32 %v1122, %v1120
        %v1125 = vmul.f32 %v1123, 0.33333334
        %v1126 = vmul.f32 %v1124, 0.33333334
        %v1127 = vld [vmem:[#allocation7] sm:$0xff]
        %v1128 = vld [vmem:[%s8] sm:$0xff]
        %1129 = vrot.lane.b32.xlu0 %v1125, 1
        %v1130 = vpop.permute.xlu0 %1129
        %1131 = vrot.lane.b32.xlu0 %v1126, 1
        %v1132 = vpop.permute.xlu0 %1131
        %1133 = vrot.lane.b32.xlu0 %v1125, 2
        %v1134 = vpop.permute.xlu0 %1133
        %1135 = vrot.lane.b32.xlu0 %v1126, 2
        %v1136 = vpop.permute.xlu0 %1135
        %1137 = vrot.lane.b32.xlu0 %v1125, 127
        %v1138 = vpop.permute.xlu0 %1137
        %1139 = vrot.lane.b32.xlu0 %v1126, 127
        %v1140 = vpop.permute.xlu0 %1139
        %1141 = vrot.lane.b32.xlu0 %v1125, 126
        %v1142 = vpop.permute.xlu0 %1141
        %1143 = vrot.lane.b32.xlu0 %v1126, 126
        %v1144 = vpop.permute.xlu0 %1143
        %v1145 = vsel %vm482, %v1125, %v1130
        %v1146 = vsel %vm482, %v1126, %v1132
        %v1147 = vsel %vm485, %v1145, %v1134
        %v1148 = vsel %vm485, %v1146, %v1136
        %v1149 = vsel %vm488, %v1125, %v1138
        %v1150 = vsel %vm488, %v1126, %v1140
        %v1151 = vsel %vm491, %v1149, %v1142
        %v1152 = vsel %vm491, %v1150, %v1144
        %v1154 = vsel %vm917, %v1127, 0
        %1156 = vmatprep.subr.mxu0 0.0
        %1157 = vmatpush1.msra.mxu0 %v1147
        %1158 = vmatprep.subr.mxu0 0.0
        %1159 = vmatpush1.msra.mxu0 %v1148
        %1160 = vmatprep.subr.mxu0 0.0
        %1161 = vmatpush1.msra.mxu0 %v1145
        %1162 = vmatprep.subr.mxu0 0.0
        %1163 = vmatpush1.msra.mxu0 %v1146
        %1164 = vmatprep.subr.mxu0 0.0
        %1165 = vmatpush1.msra.mxu0 %v1125
        %1166 = vmatprep.subr.mxu0 0.0
        %1167 = vmatpush1.msra.mxu0 %v1126
        %1168 = vmatprep.subr.mxu0 0.0
        %1169 = vmatpush1.msra.mxu0 %v1149
        %1170 = vmatprep.subr.mxu0 0.0
        %1171 = vmatpush1.msra.mxu0 %v1150
        %1172 = vmatprep.subr.mxu0 0.0
        %1173 = vmatpush1.msra.mxu0 %v1151
        %1174 = vmatprep.subr.mxu0 0.0
        %1175 = vmatpush1.msra.mxu0 %v1152
        %1176 = vmatprep.subr.mxu0 0.0
        %1177 = vmatpush1.msra.mxu0 %v469
        %1178 = vmatprep.subr.mxu0 0.0
        %1179 = vmatpush1.msra.mxu0 0.0
        %1180 = vmatprep.subr.mxu0 0.0
        %1181 = vmatpush1.msra.mxu0 0.0
        %1182 = vmatprep.subr.mxu0 0.0
        %1183 = vmatpush1.msra.mxu0 0.0
        %1184 = vmatprep.subr.mxu0 0.0
        %1185 = vmatpush1.msra.mxu0 0.0
        %1186 = vmatprep.subr.mxu0 0.0
        %1187 = vmatpush1.msra.mxu0 0.0
        %1188 = vmatprep.subr.mxu0 0.0
        %1189 = vmatpush1.msra.mxu0 0.0
        %1190 = vmatprep.subr.mxu0 0.0
        %1191 = vmatpush1.msra.mxu0 0.0
        %1192 = vmatprep.subr.mxu0 0.0
        %1193 = vmatpush1.msra.mxu0 0.0
        %1194 = vmatprep.subr.mxu0 0.0
        %1195 = vmatpush1.msra.mxu0 0.0
        %1196 = vmatprep.subr.mxu0 0.0
        %1197 = vmatpush1.msra.mxu0 0.0
        %1198 = vmatprep.subr.mxu0 0.0
        %1199 = vmatpush1.msra.mxu0 0.0
        %1200 = vmatprep.subr.mxu0 0.0
        %1201 = vmatpush1.msra.mxu0 0.0
        %1202 = vmatprep.subr.mxu0 0.0
        %1203 = vmatpush1.msra.mxu0 0.0
        %1204 = vmatprep.subr.mxu0 0.0
        %1205 = vmatpush1.msra.mxu0 0.0
        %1206 = vmatprep.subr.mxu0 0.0
        %1207 = vmatpush1.msra.mxu0 0.0
        %1208 = vmatprep.subr.mxu0 0.0
        %1209 = vmatpush1.msra.mxu0 0.0
        %1210 = vmatprep.subr.mxu0 0.0
        %1211 = vmatpush1.msra.mxu0 0.0
        %1212 = vmatprep.subr.mxu0 0.0
        %1213 = vmatpush1.msra.mxu0 0.0
        %1214 = vmatprep.subr.mxu0 0.0
        %1215 = vmatpush1.msra.mxu0 0.0
        %1216 = vmatprep.subr.mxu0 0.0
        %1217 = vmatpush1.msra.mxu0 0.0
        %1218 = vmatprep.subr.mxu0 0.0
        %1219 = vmatpush1.msra.mxu0 0.0
        %1220 = vmatprep.mubr.f32.mxu0 0.0
        %1221 = vmatmul.mubr.f32.gmra.mrb[0].mxu0 %v1154
        %v1222 = vpop.f32.mrb[0].mxu0
        %v1223 = vadd.f32 0.0, %v1222
        %v1224 = vpop.f32.mrb[0].mxu0
        %1225 = vdwg.mxu0
        %v1226 = vmax.f32 %v1223, 0.0
        %1227 = vrot.lane.b32.xlu0 %v1226, 1
        %v1228 = vpop.permute.xlu0 %1227
        %1229 = vrot.lane.b32.xlu0 %v1226, 2
        %v1230 = vpop.permute.xlu0 %1229
        %1231 = vrot.lane.b32.xlu0 %v1226, 127
        %v1232 = vpop.permute.xlu0 %1231
        %1233 = vrot.lane.b32.xlu0 %v1226, 126
        %v1234 = vpop.permute.xlu0 %1233
        %v1235 = vsel %vm482, %v1226, %v1228
        %v1236 = vsel %vm485, %v1235, %v1230
        %v1237 = vsel %vm488, %v1226, %v1232
        %v1238 = vsel %vm491, %v1237, %v1234
        %vm1239 = vcmask 523264
        %v1241 = vsel %vm1239, %v1128, 0
        %1243 = vmatprep.subr.mxu0 0.0
        %1244 = vmatpush1.msra.mxu0 %v1236
        %1245 = vmatprep.subr.mxu0 0.0
        %1246 = vmatpush1.msra.mxu0 %v1235
        %1247 = vmatprep.subr.mxu0 0.0
        %1248 = vmatpush1.msra.mxu0 %v1226
        %1249 = vmatprep.subr.mxu0 0.0
        %1250 = vmatpush1.msra.mxu0 %v1237
        %1251 = vmatprep.subr.mxu0 0.0
        %1252 = vmatpush1.msra.mxu0 %v1238
        %1253 = vmatprep.subr.mxu0 0.0
        %1254 = vmatpush1.msra.mxu0 %v1125
        %1255 = vmatprep.subr.mxu0 0.0
        %1256 = vmatpush1.msra.mxu0 %v1126
        %1257 = vmatprep.subr.mxu0 0.0
        %1258 = vmatpush1.msra.mxu0 %v469
        %1259 = vmatprep.subr.mxu0 0.0
        %1260 = vmatpush1.msra.mxu0 0.0
        %1261 = vmatprep.subr.mxu0 0.0
        %1262 = vmatpush1.msra.mxu0 0.0
        %1263 = vmatprep.subr.mxu0 0.0
        %1264 = vmatpush1.msra.mxu0 0.0
        %1265 = vmatprep.subr.mxu0 0.0
        %1266 = vmatpush1.msra.mxu0 0.0
        %1267 = vmatprep.subr.mxu0 0.0
        %1268 = vmatpush1.msra.mxu0 0.0
        %1269 = vmatprep.subr.mxu0 0.0
        %1270 = vmatpush1.msra.mxu0 0.0
        %1271 = vmatprep.subr.mxu0 0.0
        %1272 = vmatpush1.msra.mxu0 0.0
        %1273 = vmatprep.subr.mxu0 0.0
        %1274 = vmatpush1.msra.mxu0 0.0
        %1275 = vmatprep.subr.mxu0 0.0
        %1276 = vmatpush1.msra.mxu0 0.0
        %1277 = vmatprep.subr.mxu0 0.0
        %1278 = vmatpush1.msra.mxu0 0.0
        %1279 = vmatprep.subr.mxu0 0.0
        %1280 = vmatpush1.msra.mxu0 0.0
        %1281 = vmatprep.subr.mxu0 0.0
        %1282 = vmatpush1.msra.mxu0 0.0
        %1283 = vmatprep.subr.mxu0 0.0
        %1284 = vmatpush1.msra.mxu0 0.0
        %1285 = vmatprep.subr.mxu0 0.0
        %1286 = vmatpush1.msra.mxu0 0.0
        %1287 = vmatprep.subr.mxu0 0.0
        %1288 = vmatpush1.msra.mxu0 0.0
        %1289 = vmatprep.subr.mxu0 0.0
        %1290 = vmatpush1.msra.mxu0 0.0
        %1291 = vmatprep.subr.mxu0 0.0
        %1292 = vmatpush1.msra.mxu0 0.0
        %1293 = vmatprep.subr.mxu0 0.0
        %1294 = vmatpush1.msra.mxu0 0.0
        %1295 = vmatprep.subr.mxu0 0.0
        %1296 = vmatpush1.msra.mxu0 0.0
        %1297 = vmatprep.subr.mxu0 0.0
        %1298 = vmatpush1.msra.mxu0 0.0
        %1299 = vmatprep.subr.mxu0 0.0
        %1300 = vmatpush1.msra.mxu0 0.0
        %1301 = vmatprep.subr.mxu0 0.0
        %1302 = vmatpush1.msra.mxu0 0.0
        %1303 = vmatprep.subr.mxu0 0.0
        %1304 = vmatpush1.msra.mxu0 0.0
        %1305 = vmatprep.subr.mxu0 0.0
        %1306 = vmatpush1.msra.mxu0 0.0
        %1307 = vmatprep.mubr.f32.mxu0 0.0
        %1308 = vmatmul.mubr.f32.gmra.mrb[0].mxu0 %v1241
        %v1309 = vpop.f32.mrb[0].mxu0
        %v1310 = vadd.f32 0.0, %v1309
        %v1311 = vpop.f32.mrb[0].mxu0
        %1312 = vdwg.mxu0
        %v1313 = vmax.f32 %v1310, 0.0
        %1314 = vrot.lane.b32.xlu0 %v1313, 1
        %v1315 = vpop.permute.xlu0 %1314
        %v1316 = vsel %vm482, 0.0, %v1315
        %1317 = vrot.lane.b32.xlu0 %v1313, 127
        %v1318 = vpop.permute.xlu0 %1317
        %v1319 = vsel %vm488, 0.0, %v1318
        %v1320 = vadd.f32 %v1316, %v1313
        %v1321 = vadd.f32 %v1320, %v1319
        %v1322 = vmul.f32 %v1321, 0.33333334
        %v1323 = vld [vmem:[#allocation9] sm:$0xff]
        %v1324 = vld [vmem:[%s10] sm:$0xff]
        %1325 = vrot.lane.b32.xlu0 %v1322, 1
        %v1326 = vpop.permute.xlu0 %1325
        %1327 = vrot.lane.b32.xlu0 %v1322, 2
        %v1328 = vpop.permute.xlu0 %1327
        %1329 = vrot.lane.b32.xlu0 %v1322, 127
        %v1330 = vpop.permute.xlu0 %1329
        %1331 = vrot.lane.b32.xlu0 %v1322, 126
        %v1332 = vpop.permute.xlu0 %1331
        %v1333 = vsel %vm482, %v1322, %v1326
        %v1334 = vsel %vm485, %v1333, %v1328
        %v1335 = vsel %vm488, %v1322, %v1330
        %v1336 = vsel %vm491, %v1335, %v1332
        %v1338 = vsel %vm493, %v1323, 0
        %1340 = vmatprep.subr.mxu0 0.0
        %1341 = vmatpush1.msra.mxu0 %v1334
        %1342 = vmatprep.subr.mxu0 0.0
        %1343 = vmatpush1.msra.mxu0 %v1333
        %1344 = vmatprep.subr.mxu0 0.0
        %1345 = vmatpush1.msra.mxu0 %v1322
        %1346 = vmatprep.subr.mxu0 0.0
        %1347 = vmatpush1.msra.mxu0 %v1335
        %1348 = vmatprep.subr.mxu0 0.0
        %1349 = vmatpush1.msra.mxu0 %v1336
        %1350 = vmatprep.subr.mxu0 0.0
        %1351 = vmatpush1.msra.mxu0 %v469
        %1352 = vmatprep.subr.mxu0 0.0
        %1353 = vmatpush1.msra.mxu0 0.0
        %1354 = vmatprep.subr.mxu0 0.0
        %1355 = vmatpush1.msra.mxu0 0.0
        %1356 = vmatprep.subr.mxu0 0.0
        %1357 = vmatpush1.msra.mxu0 0.0
        %1358 = vmatprep.subr.mxu0 0.0
        %1359 = vmatpush1.msra.mxu0 0.0
        %1360 = vmatprep.subr.mxu0 0.0
        %1361 = vmatpush1.msra.mxu0 0.0
        %1362 = vmatprep.subr.mxu0 0.0
        %1363 = vmatpush1.msra.mxu0 0.0
        %1364 = vmatprep.subr.mxu0 0.0
        %1365 = vmatpush1.msra.mxu0 0.0
        %1366 = vmatprep.subr.mxu0 0.0
        %1367 = vmatpush1.msra.mxu0 0.0
        %1368 = vmatprep.subr.mxu0 0.0
        %1369 = vmatpush1.msra.mxu0 0.0
        %1370 = vmatprep.subr.mxu0 0.0
        %1371 = vmatpush1.msra.mxu0 0.0
        %1372 = vmatprep.subr.mxu0 0.0
        %1373 = vmatpush1.msra.mxu0 0.0
        %1374 = vmatprep.subr.mxu0 0.0
        %1375 = vmatpush1.msra.mxu0 0.0
        %1376 = vmatprep.subr.mxu0 0.0
        %1377 = vmatpush1.msra.mxu0 0.0
        %1378 = vmatprep.subr.mxu0 0.0
        %1379 = vmatpush1.msra.mxu0 0.0
        %1380 = vmatprep.subr.mxu0 0.0
        %1381 = vmatpush1.msra.mxu0 0.0
        %1382 = vmatprep.subr.mxu0 0.0
        %1383 = vmatpush1.msra.mxu0 0.0
        %1384 = vmatprep.subr.mxu0 0.0
        %1385 = vmatpush1.msra.mxu0 0.0
        %1386 = vmatprep.subr.mxu0 0.0
        %1387 = vmatpush1.msra.mxu0 0.0
        %1388 = vmatprep.subr.mxu0 0.0
        %1389 = vmatpush1.msra.mxu0 0.0
        %1390 = vmatprep.subr.mxu0 0.0
        %1391 = vmatpush1.msra.mxu0 0.0
        %1392 = vmatprep.subr.mxu0 0.0
        %1393 = vmatpush1.msra.mxu0 0.0
        %1394 = vmatprep.subr.mxu0 0.0
        %1395 = vmatpush1.msra.mxu0 0.0
        %1396 = vmatprep.subr.mxu0 0.0
        %1397 = vmatpush1.msra.mxu0 0.0
        %1398 = vmatprep.subr.mxu0 0.0
        %1399 = vmatpush1.msra.mxu0 0.0
        %1400 = vmatprep.subr.mxu0 0.0
        %1401 = vmatpush1.msra.mxu0 0.0
        %1402 = vmatprep.subr.mxu0 0.0
        %1403 = vmatpush1.msra.mxu0 0.0
        %1404 = vmatprep.mubr.f32.mxu0 0.0
        %1405 = vmatmul.mubr.f32.gmra.mrb[0].mxu0 %v1338
        %v1406 = vpop.f32.mrb[0].mxu0
        %v1407 = vadd.f32 0.0, %v1406
        %v1408 = vpop.f32.mrb[0].mxu0
        %1409 = vdwg.mxu0
        %v1410 = vmax.f32 %v1407, 0.0
        %1411 = vrot.lane.b32.xlu0 %v1410, 1
        %v1412 = vpop.permute.xlu0 %1411
        %1413 = vrot.lane.b32.xlu0 %v1410, 2
        %v1414 = vpop.permute.xlu0 %1413
        %1415 = vrot.lane.b32.xlu0 %v1410, 127
        %v1416 = vpop.permute.xlu0 %1415
        %1417 = vrot.lane.b32.xlu0 %v1410, 126
        %v1418 = vpop.permute.xlu0 %1417
        %v1419 = vsel %vm482, %v1410, %v1412
        %v1420 = vsel %vm485, %v1419, %v1414
        %v1421 = vsel %vm488, %v1410, %v1416
        %v1422 = vsel %vm491, %v1421, %v1418
        %v1424 = vsel %vm580, %v1324, 0
        %1426 = vmatprep.subr.mxu0 0.0
        %1427 = vmatpush1.msra.mxu0 %v1420
        %1428 = vmatprep.subr.mxu0 0.0
        %1429 = vmatpush1.msra.mxu0 %v1419
        %1430 = vmatprep.subr.mxu0 0.0
        %1431 = vmatpush1.msra.mxu0 %v1410
        %1432 = vmatprep.subr.mxu0 0.0
        %1433 = vmatpush1.msra.mxu0 %v1421
        %1434 = vmatprep.subr.mxu0 0.0
        %1435 = vmatpush1.msra.mxu0 %v1422
        %1436 = vmatprep.subr.mxu0 0.0
        %1437 = vmatpush1.msra.mxu0 %v1322
        %1438 = vmatprep.subr.mxu0 0.0
        %1439 = vmatpush1.msra.mxu0 %v469
        %1440 = vmatprep.subr.mxu0 0.0
        %1441 = vmatpush1.msra.mxu0 0.0
        %1442 = vmatprep.subr.mxu0 0.0
        %1443 = vmatpush1.msra.mxu0 0.0
        %1444 = vmatprep.subr.mxu0 0.0
        %1445 = vmatpush1.msra.mxu0 0.0
        %1446 = vmatprep.subr.mxu0 0.0
        %1447 = vmatpush1.msra.mxu0 0.0
        %1448 = vmatprep.subr.mxu0 0.0
        %1449 = vmatpush1.msra.mxu0 0.0
        %1450 = vmatprep.subr.mxu0 0.0
        %1451 = vmatpush1.msra.mxu0 0.0
        %1452 = vmatprep.subr.mxu0 0.0
        %1453 = vmatpush1.msra.mxu0 0.0
        %1454 = vmatprep.subr.mxu0 0.0
        %1455 = vmatpush1.msra.mxu0 0.0
        %1456 = vmatprep.subr.mxu0 0.0
        %1457 = vmatpush1.msra.mxu0 0.0
        %1458 = vmatprep.subr.mxu0 0.0
        %1459 = vmatpush1.msra.mxu0 0.0
        %1460 = vmatprep.subr.mxu0 0.0
        %1461 = vmatpush1.msra.mxu0 0.0
        %1462 = vmatprep.subr.mxu0 0.0
        %1463 = vmatpush1.msra.mxu0 0.0
        %1464 = vmatprep.subr.mxu0 0.0
        %1465 = vmatpush1.msra.mxu0 0.0
        %1466 = vmatprep.subr.mxu0 0.0
        %1467 = vmatpush1.msra.mxu0 0.0
        %1468 = vmatprep.subr.mxu0 0.0
        %1469 = vmatpush1.msra.mxu0 0.0
        %1470 = vmatprep.subr.mxu0 0.0
        %1471 = vmatpush1.msra.mxu0 0.0
        %1472 = vmatprep.subr.mxu0 0.0
        %1473 = vmatpush1.msra.mxu0 0.0
        %1474 = vmatprep.subr.mxu0 0.0
        %1475 = vmatpush1.msra.mxu0 0.0
        %1476 = vmatprep.subr.mxu0 0.0
        %1477 = vmatpush1.msra.mxu0 0.0
        %1478 = vmatprep.subr.mxu0 0.0
        %1479 = vmatpush1.msra.mxu0 0.0
        %1480 = vmatprep.subr.mxu0 0.0
        %1481 = vmatpush1.msra.mxu0 0.0
        %1482 = vmatprep.subr.mxu0 0.0
        %1483 = vmatpush1.msra.mxu0 0.0
        %1484 = vmatprep.subr.mxu0 0.0
        %1485 = vmatpush1.msra.mxu0 0.0
        %1486 = vmatprep.subr.mxu0 0.0
        %1487 = vmatpush1.msra.mxu0 0.0
        %1488 = vmatprep.subr.mxu0 0.0
        %1489 = vmatpush1.msra.mxu0 0.0
        %1490 = vmatprep.mubr.f32.mxu0 0.0
        %1491 = vmatmul.mubr.f32.gmra.mrb[0].mxu0 %v1424
        %v1492 = vpop.f32.mrb[0].mxu0
        %v1493 = vadd.f32 0.0, %v1492
        %v1494 = vpop.f32.mrb[0].mxu0
        %1495 = vdwg.mxu0
        %v1496 = vmax.f32 %v1493, 0.0
        %1497 = vrot.lane.b32.xlu0 %v1496, 1
        %v1498 = vpop.permute.xlu0 %1497
        %v1499 = vsel %vm482, 0.0, %v1498
        %1500 = vrot.lane.b32.xlu0 %v1496, 127
        %v1501 = vpop.permute.xlu0 %1500
        %v1502 = vsel %vm488, 0.0, %v1501
        %v1503 = vadd.f32 %v1499, %v1496
        %v1504 = vadd.f32 %v1503, %v1502
        %v1505 = vmul.f32 %v1504, 0.33333334
        %1506 = vst [vmem:[%s446] sm:$0xff] %v1505
        %p1507 = scmp.lt.s32.totalorder %s25, 1
        %s1508 = scalar_select %p1507, %s25, 1
        %s1509 = smul.addr %s1508, 8
        %s1510 = scalar_lea.vmem %s11, %s1509
        // Predicated region
        $region85: #{cnn1d_forward.1} parent=63 // pred_check
          %p1511 = pneg %p279
        $region86: #{cnn1d_forward.1} parent=63 // pred_check_branch
          %1513 = sbr.rel (%p1511) target = $region88
        $region87: #{cnn1d_forward.1} parent=63 // pred_region
          _
        $region88: #{cnn1d_forward.1} parent=63 // pred_fallthru
          _
      $region64: #{cnn1d_forward.1} parent=5 // pred_fallthru
        _
      %p1514 = scmp.le.s32.totalorder 2, %s20
      // Predicated region
      $region89: #{cnn1d_forward.1} parent=5 // pred_check
        %p1515 = pneg %p1514
      $region90: #{cnn1d_forward.1} parent=5 // pred_check_branch
        %1517 = sbr.rel (%p1515) target = $region92
      $region91: #{cnn1d_forward.1} parent=5 // pred_region
        %s1518 = ssub.s32 %s20, 2
        // Predicated region
        $region93: #{cnn1d_forward.1} parent=91 // pred_check
          %p1519 = pneg %p285
        $region94: #{cnn1d_forward.1} parent=91 // pred_check_branch
          %1521 = sbr.rel (%p1519) target = $region96
        $region95: #{cnn1d_forward.1} parent=91 // pred_region
          %p1522 = scmp.lt.s32.totalorder %s26, 1
          %s1523 = scalar_select %p1522, %s26, 1
          %s1524 = smul.addr %s1523, 8
          %s1525 = scalar_lea.vmem %s11, %s1524
        $region96: #{cnn1d_forward.1} parent=91 // pred_fallthru
          _
      $region92: #{cnn1d_forward.1} parent=5 // pred_fallthru
        _
    $region6: #{cnn1d_forward.1} parent=1 // loop_footer
      %s24 = sadd.s32 1, %s20
    $region7: #{cnn1d_forward.1} parent=1 // loop_footer_branch
      %19 = sbr.rel target = $region3
    $region8: #{cnn1d_forward.1} parent=1 // loop_exit
      _
    %1526 = vsyncpa [#allocation3], 1
    %s1527 = scalar_lea.sflag [#allocation3], 1
    %1528 = vsyncpa %s1527, 1
    %1529 = vsyncpa [#allocation5], 1
    %1530 = vsyncpa [#allocation8], 1

</llo_original>
